<compile_context>
chip_gen: v6e
topology: v6e:2x2x1
jax: 0.10.0
libtpu: 0.0.40
codegen_flags: <defaults>
</compile_context>

<pallas_src>
import jax
import jax.numpy as jnp
from jax.experimental import pallas as pl
from jax.experimental.pallas import tpu as pltpu

C_IN = 768
C_HID = 96
C_HID_PAD = 128   # hidden dim zero-padded to a full lane width (exact math)
C_OUT = 256

_X_TILE_BUDGET_BYTES = 4 * 1024 * 1024   # cap on one bf16 x tile when batch-folding


def updatenet_kernel(x_ref, w1_ref, b1_ref, w2_ref, b2_ref, o_ref):
    # x_ref:  (bn, C_IN, TN) bf16     -- bn batch samples, TN spatial columns
    # w1_ref: (C_HID_PAD, C_IN) bf16     b1_ref: (C_HID_PAD, 1) f32
    # w2_ref: (C_OUT, C_HID_PAD) bf16    b2_ref: (C_OUT, 1) f32
    # o_ref:  (bn, C_OUT, TN) f32
    w1 = w1_ref[...]
    b1 = b1_ref[...]
    w2 = w2_ref[...]
    b2 = b2_ref[...]
    for b in range(x_ref.shape[0]):            # static, small (<= ~8)
        h = jnp.dot(w1, x_ref[b], preferred_element_type=jnp.float32)
        h = jnp.maximum(h + b1, 0.0).astype(jnp.bfloat16)      # bias + ReLU
        y = jnp.dot(w2, h, preferred_element_type=jnp.float32)
        o_ref[b] = (y + b2).astype(o_ref.dtype)


def _choose_tiling(n, cols, tn_max):
    """Pick (bn, tn): bn batch samples and tn spatial columns per grid step.

    Grid = (n // bn, cdiv(cols, tn)).  bn always divides n; ragged spatial
    tails are handled by Pallas block masking (no pad/crop copies).  The total
    number of grid steps is kept >= 2 whenever possible so ('parallel', ...)
    megacore sharding keeps both v7x TensorCores busy.
    """
    if cols > tn_max:
        # Stream the spatial axis in large lane-aligned tiles (>= 2 tiles).
        return 1, tn_max
    if n == 1:
        # Force >= 2 spatial tiles (multiples of 128) even though one
        # full-extent tile would fit, so the second TensorCore is not idle.
        if cols > 128:
            return 1, 128 * pl.cdiv(pl.cdiv(cols, 2), 128)
        return 1, cols   # too small to split
    # Whole spatial extent in one tile; fold several batch samples per step to
    # amortize per-step overhead, keeping >= 2 steps (bn <= n // 2).
    bn = 1
    for cand in range(n // 2, 0, -1):
        if n % cand == 0 and cand * cols * C_IN * 2 <= _X_TILE_BUDGET_BYTES:
            bn = cand
            break
    return bn, cols


def _vmem_limit_bytes(bn, tn):
    """Scoped-VMEM limit derived from the actual tile footprint (+50% slack)."""
    need = (
        2 * bn * C_IN * tn * 2                          # x tile, bf16, double-buffered
        + 2 * bn * C_OUT * tn * 4                       # out tile, f32, double-buffered
        + (C_HID_PAD * C_IN + C_OUT * C_HID_PAD) * 2    # weights, single buffer
        + (C_HID_PAD + C_OUT) * 4                       # biases
        + 3 * C_HID_PAD * tn * 4                        # in-kernel temporaries
    )
    return min(max(int(need * 1.5), 16 * 1024 * 1024), 48 * 1024 * 1024)


def updatenet_forward(x_nchw, w1, b1, w2, b2, *, tn_max=2048):
    """x_nchw: (N, 768, H, W); w1: (96, 768); b1: (96,); w2: (256, 96); b2: (256,).

    Returns (N, 256, H, W) float32.  x and the weights are stored as bf16 for
    the MXU (f32 accumulation); pass x already in bfloat16 to skip the convert.
    """
    n, c, h, w = x_nchw.shape
    assert c == C_IN
    cols = h * w

    # NCHW -> (N, C_in, H*W): reshape of trailing dims only, no transpose.
    x_cols = x_nchw.reshape(n, C_IN, cols).astype(jnp.bfloat16)

    # Zero-pad the hidden channel dim 96 -> 128 (exact: padded rows of h are
    # ReLU(0)=0 and the matching columns of w2 are zero).
    w1_p = jnp.zeros((C_HID_PAD, C_IN), jnp.bfloat16).at[:C_HID, :].set(
        w1.astype(jnp.bfloat16))
    b1_p = jnp.zeros((C_HID_PAD, 1), jnp.float32).at[:C_HID, 0].set(
        b1.astype(jnp.float32))
    w2_p = jnp.zeros((C_OUT, C_HID_PAD), jnp.bfloat16).at[:, :C_HID].set(
        w2.astype(jnp.bfloat16))
    b2_p = b2.astype(jnp.float32).reshape(C_OUT, 1)

    bn, tn = _choose_tiling(n, cols, tn_max)
    grid = (n // bn, pl.cdiv(cols, tn))

    const = pl.Buffered(1)   # constant index map -> fetched once, single buffer
    out = pl.pallas_call(
        updatenet_kernel,
        out_shape=jax.ShapeDtypeStruct((n, C_OUT, cols), jnp.float32),
        grid_spec=pl.GridSpec(
            grid=grid,
            in_specs=[
                pl.BlockSpec((bn, C_IN, tn), lambda b, j: (b, 0, j)),
                pl.BlockSpec((C_HID_PAD, C_IN), lambda b, j: (0, 0),
                             pipeline_mode=const),
                pl.BlockSpec((C_HID_PAD, 1), lambda b, j: (0, 0),
                             pipeline_mode=const),
                pl.BlockSpec((C_OUT, C_HID_PAD), lambda b, j: (0, 0),
                             pipeline_mode=const),
                pl.BlockSpec((C_OUT, 1), lambda b, j: (0, 0),
                             pipeline_mode=const),
            ],
            out_specs=pl.BlockSpec((bn, C_OUT, tn), lambda b, j: (b, 0, j)),
        ),
        compiler_params=pltpu.CompilerParams(
            dimension_semantics=("parallel", "parallel"),
            vmem_limit_bytes=_vmem_limit_bytes(bn, tn),
        ),
    )(x_cols, w1_p, b1_p, w2_p, b2_p)

    # (N, 256, H*W) -> NCHW (N, 256, H, W): pure reshape, no transpose.
    return out.reshape(n, C_OUT, h, w)


def _reference(x_nchw, w1, b1, w2, b2):
    # Pure-JAX reference of Conv1x1 -> ReLU -> Conv1x1 (NCHW), f32.
    h = jnp.einsum("nchw,oc->nohw", x_nchw, w1) + b1[None, :, None, None]
    h = jnp.maximum(h, 0.0)
    return jnp.einsum("nchw,oc->nohw", h, w2) + b2[None, :, None, None]


if __name__ == "__main__":
    key = jax.random.PRNGKey(0)
    kx, k1, kb1, k2, kb2 = jax.random.split(key, 5)

    # Small spatial shape consistent with the module: N=2, C=768, H=W=16.
    N, H, W = 2, 16, 16
    x = jax.random.normal(kx, (N, C_IN, H, W), dtype=jnp.float32)

    # Synthetic parameters (nn.Conv2d 1x1 kernels squeezed to 2-D matrices).
    w1 = jax.random.normal(k1, (C_HID, C_IN), dtype=jnp.float32) * 0.02
    b1 = jax.random.normal(kb1, (C_HID,), dtype=jnp.float32) * 0.02
    w2 = jax.random.normal(k2, (C_OUT, C_HID), dtype=jnp.float32) * 0.02
    b2 = jax.random.normal(kb2, (C_OUT,), dtype=jnp.float32) * 0.02

    out = jax.block_until_ready(updatenet_forward(x, w1, b1, w2, b2))
    ref = _reference(x, w1, b1, w2, b2)

    assert out.shape == (N, C_OUT, H, W)
    # bf16 storage / MXU math with f32 accumulation vs pure-f32 reference.
    max_err = float(jnp.max(jnp.abs(out - ref)))
    assert jnp.allclose(out, ref, atol=2e-2, rtol=2e-2), (
        f"mismatch vs reference (max abs err {max_err})")

    print("KERNEL_OK")
</pallas_src>

<mosaic_0001>
module attributes {stable_mosaic.version = 11 : i64} {
  func.func @updatenet_kernel(%arg0: i32, %arg1: i32, %arg2: memref<1x768x256xbf16, #tpu.memory_space<vmem>>, %arg3: memref<128x768xbf16, #tpu.memory_space<vmem>>, %arg4: memref<128x1xf32, #tpu.memory_space<vmem>>, %arg5: memref<256x128xbf16, #tpu.memory_space<vmem>>, %arg6: memref<256x1xf32, #tpu.memory_space<vmem>>, %arg7: memref<1x256x256xf32, #tpu.memory_space<vmem>>) attributes {dimension_semantics = [#tpu.dimension_semantics<parallel>, #tpu.dimension_semantics<parallel>], iteration_bounds = array<i64: 2, 1>, scalar_prefetch = 0 : i64, scratch_operands = 0 : i64, tpu.core_type = #tpu.core_type<tc>, window_params = [{transform_indices = @transform_0, window_bounds = array<i64: 1, 768, 256>}, {pipeline_mode = #tpu.pipeline_mode<synchronous>, transform_indices = @transform_1, window_bounds = array<i64: 128, 768>}, {pipeline_mode = #tpu.pipeline_mode<synchronous>, transform_indices = @transform_2, window_bounds = array<i64: 128, 1>}, {pipeline_mode = #tpu.pipeline_mode<synchronous>, transform_indices = @transform_3, window_bounds = array<i64: 256, 128>}, {pipeline_mode = #tpu.pipeline_mode<synchronous>, transform_indices = @transform_4, window_bounds = array<i64: 256, 1>}, {transform_indices = @transform_5, window_bounds = array<i64: 1, 256, 256>}]} {
    %c0 = arith.constant 0 : index
    %c0_0 = arith.constant 0 : index
    %0 = vector.load %arg3[%c0, %c0_0] : memref<128x768xbf16, #tpu.memory_space<vmem>>, vector<128x768xbf16>
    %c0_1 = arith.constant 0 : index
    %c0_2 = arith.constant 0 : index
    %1 = vector.load %arg4[%c0_1, %c0_2] : memref<128x1xf32, #tpu.memory_space<vmem>>, vector<128x1xf32>
    %c0_3 = arith.constant 0 : index
    %c0_4 = arith.constant 0 : index
    %2 = vector.load %arg5[%c0_3, %c0_4] : memref<256x128xbf16, #tpu.memory_space<vmem>>, vector<256x128xbf16>
    %c0_5 = arith.constant 0 : index
    %c0_6 = arith.constant 0 : index
    %3 = vector.load %arg6[%c0_5, %c0_6] : memref<256x1xf32, #tpu.memory_space<vmem>>, vector<256x1xf32>
    %c0_7 = arith.constant 0 : index
    %c0_8 = arith.constant 0 : index
    %c0_9 = arith.constant 0 : index
    %4 = vector.load %arg2[%c0_7, %c0_8, %c0_9] : memref<1x768x256xbf16, #tpu.memory_space<vmem>>, vector<1x768x256xbf16>
    %5 = vector.shape_cast %4 : vector<1x768x256xbf16> to vector<768x256xbf16>
    %cst = arith.constant dense<0.000000e+00> : vector<128x256xf32>
    %6 = tpu.matmul %0, %5, %cst {dimension_numbers = #tpu.dot_dimension_numbers<[1], [0], [0], [1], [0, 0, 1, 1], [], []>} : vector<128x768xbf16>, vector<768x256xbf16>, vector<128x256xf32> -> vector<128x256xf32>
    %7 = vector.broadcast %1 : vector<128x1xf32> to vector<128x256xf32>
    %8 = arith.addf %6, %7 : vector<128x256xf32>
    %cst_10 = arith.constant 0.000000e+00 : f32
    %9 = vector.broadcast %cst_10 : f32 to vector<128x256xf32>
    %10 = arith.maximumf %8, %9 : vector<128x256xf32>
    %11 = arith.truncf %10 : vector<128x256xf32> to vector<128x256xbf16>
    %cst_11 = arith.constant dense<0.000000e+00> : vector<256x256xf32>
    %12 = tpu.matmul %2, %11, %cst_11 {dimension_numbers = #tpu.dot_dimension_numbers<[1], [0], [0], [1], [0, 0, 1, 1], [], []>} : vector<256x128xbf16>, vector<128x256xbf16>, vector<256x256xf32> -> vector<256x256xf32>
    %13 = vector.broadcast %3 : vector<256x1xf32> to vector<256x256xf32>
    %14 = arith.addf %12, %13 : vector<256x256xf32>
    %c0_12 = arith.constant 0 : index
    %c0_13 = arith.constant 0 : index
    %c0_14 = arith.constant 0 : index
    %15 = vector.load %arg7[%c0_12, %c0_13, %c0_14] : memref<1x256x256xf32, #tpu.memory_space<vmem>>, vector<1x256x256xf32>
    %16 = vector.shape_cast %15 : vector<1x256x256xf32> to vector<256x256xf32>
    %17 = vector.shape_cast %14 : vector<256x256xf32> to vector<1x256x256xf32>
    tpu.vector_store %arg7[%c0_12, %c0_13, %c0_14], %17 {strides = array<i32>} : memref<1x256x256xf32, #tpu.memory_space<vmem>>, vector<1x256x256xf32>,
    return
  }
  func.func @transform_0(%arg0: i32, %arg1: i32) -> (i32, i32, i32) {
    %c0_i32 = arith.constant 0 : i32
    %c0_i32_0 = arith.constant 0 : i32
    return %arg0, %c0_i32, %arg1 : i32, i32, i32
  }
  func.func @transform_1(%arg0: i32, %arg1: i32) -> (i32, i32) {
    %c0_i32 = arith.constant 0 : i32
    %c0_i32_0 = arith.constant 0 : i32
    %c0_i32_1 = arith.constant 0 : i32
    return %c0_i32, %c0_i32_0 : i32, i32
  }
  func.func @transform_2(%arg0: i32, %arg1: i32) -> (i32, i32) {
    %c0_i32 = arith.constant 0 : i32
    %c0_i32_0 = arith.constant 0 : i32
    %c0_i32_1 = arith.constant 0 : i32
    return %c0_i32, %c0_i32_0 : i32, i32
  }
  func.func @transform_3(%arg0: i32, %arg1: i32) -> (i32, i32) {
    %c0_i32 = arith.constant 0 : i32
    %c0_i32_0 = arith.constant 0 : i32
    %c0_i32_1 = arith.constant 0 : i32
    return %c0_i32, %c0_i32_0 : i32, i32
  }
  func.func @transform_4(%arg0: i32, %arg1: i32) -> (i32, i32) {
    %c0_i32 = arith.constant 0 : i32
    %c0_i32_0 = arith.constant 0 : i32
    %c0_i32_1 = arith.constant 0 : i32
    return %c0_i32, %c0_i32_0 : i32, i32
  }
  func.func @transform_5(%arg0: i32, %arg1: i32) -> (i32, i32, i32) {
    %c0_i32 = arith.constant 0 : i32
    %c0_i32_0 = arith.constant 0 : i32
    return %arg0, %c0_i32, %arg1 : i32, i32, i32
  }
}

</mosaic_0001>

<llo_original>
// kernel: tpu_custom_call.1
$region0: #{tpu_custom_call.1}
  #allocation0 [shape = 'u32[]', space=smem, size = 0x4, offset = 0x4, fixed_abs, tag = 'smem constant byte address 0x4 - core index']
  #allocation1 [shape = 'u32[144,128]{1,0:T(1,128)}', space=vmem, size = 0x12000, scoped, tag = 'internal scratch']
  %s0 = inlined_call_operand.hbm [shape: bf16[2,768,256], index: 0, kind: input, shape index: {}]
  %s1 = inlined_call_operand.vmem [shape: bf16[128,768], index: 1, kind: input, shape index: {}]
  %s2 = inlined_call_operand.vmem [shape: f32[128,1], index: 2, kind: input, shape index: {}]
  %s3 = inlined_call_operand.hbm [shape: bf16[256,128], index: 3, kind: input, shape index: {}]
  %s4 = inlined_call_operand.vmem [shape: f32[256,1], index: 4, kind: input, shape index: {}]
  %s5 = inlined_call_operand.hbm [shape: f32[2,256,256], index: 5, kind: output, shape index: {}]
  %s6 = sld [smem:[#allocation0]]
  $region61: #{tpu_custom_call.1} parent=0
    _
  %s8 = ssub.s32 1, %s6
  %s9 = scalar_select 0, %s8, %s6
  $region1: #{tpu_custom_call.1} parent=0
    #allocation2 [shape = 'u8[786432]{0}', space=vmem, size = 0xc0000, scoped, tag = 'input window, operand 0']
    #allocation3 [shape = 's32[2]{0}', space=sflag, size = 0x8, scoped, tag = 'scoped memory for tpu_custom_call.1']
    #allocation4 [shape = 's32[2]{0}', space=sflag, size = 0x8, scoped, tag = 'scoped memory for tpu_custom_call.1']
    #allocation5 [shape = 'u8[65536]{0}', space=vmem, size = 0x10000, scoped, tag = 'input window, operand 3, single buffered']
    #allocation6 [shape = 's32[1]{0}', space=sflag, size = 0x4, scoped, tag = 'scoped memory for tpu_custom_call.1']
    #allocation7 [shape = 'u8[524288]{0}', space=vmem, size = 0x80000, scoped, tag = 'output window, operand 0']
    %10 = vsyncpa [#allocation3], 0
    %s11 = scalar_lea.sflag [#allocation3], 1
    %12 = vsyncpa %s11, 0
    %13 = vsyncpa [#allocation6], 0
    %14 = vsyncpa [#allocation4], 0
    %s15 = scalar_lea.sflag [#allocation4], 1
    %16 = vsyncpa %s15, 0
    loop: start=0, step=1, limit=4
    $region2: #{tpu_custom_call.1} parent=1 // loop_pre_header
      _
    $region3: #{tpu_custom_call.1} parent=1 // loop_header
      %s18 = sphi 0, %s22
      %p19 = scmp.ge.s32.totalorder %s18, 4
      %s25 = sphi 0, %s37
      %s26 = sphi 0, %s33
      %s27 = sphi 0, %s25
      %s28 = sphi 0, %s26
      %s29 = sphi 0, %s27
      %s30 = sphi 0, %s28
      %s42 = sphi 0, %s44
      %s45 = sphi 0, %s42
      %s46 = sphi 0, %s45
      %s62 = sphi 0, %s46
      %s66 = sphi 0, %s66
      %s68 = sphi 0, %s66
      %s69 = sphi 0, %s68
      %s83 = sphi 0, %s69
      %s87 = sphi 0, %s87
      %s89 = sphi 0, %s87
      %s90 = sphi 0, %s89
      %s104 = sphi 0, %s90
      %s108 = sphi 0, %s108
      %s110 = sphi 0, %s108
      %s111 = sphi 0, %s110
      %s125 = sphi 0, %s111
      %s129 = sphi 0, %s129
      %s131 = sphi 0, %s129
      %s132 = sphi 0, %s131
      %s146 = sphi 0, %s132
      %s154 = sphi 0, %s156
      %s157 = sphi 0, %s154
      %s158 = sphi 0, %s157
      %s174 = sphi 0, %s158
    $region4: #{tpu_custom_call.1} parent=1 // loop_header_branch
      %21 = sbr.rel (%p19) target = $region8
    $region5: #{tpu_custom_call.1} parent=1 // loop_body
      %s23 = ssub.s32 %s18, 1
      %s24 = ssub.s32 %s18, 2
      %s31 = sadd.s32 1, %s26
      %p32 = scmp.ge.s32.totalorder %s31, 1
      %s33 = scalar_select %p32, 0, %s31
      %s34 = sadd.s32 1, %s25
      %s35 = scalar_select %p32, %s34, %s25
      %p36 = scmp.ge.s32.totalorder %s35, 2
      %s37 = scalar_select %p36, 0, %s35
      %s38 = ssub.s32 %s25, %s37
      %s39 = ssub.s32 %s26, %s33
      %s40 = sor.u32 %s38, %s39
      %p41 = scmp.eq.s32.totalorder %s40, 0
      %s43 = sadd.s32 %s42, 1
      %s44 = scalar_select %p41, %s42, %s43
      %p47 = pneg %p41
      %p48 = scmp.eq.s32.totalorder %s18, 1
      %p49 = por %p47, %p48
      %p50 = scmp.ne.s32.totalorder %s42, %s45
      %p51 = scmp.eq.s32.totalorder %s18, 0
      %p52 = por %p50, %p51
      %p53 = scmp.ne.s32.totalorder %s42, %s45
      %p54 = scmp.eq.s32.totalorder %s23, 1
      %p55 = por %p53, %p54
      %p56 = scmp.ne.s32.totalorder %s45, %s46
      %p57 = scmp.eq.s32.totalorder %s23, 0
      %p58 = por %p56, %p57
      %p59 = scmp.ne.s32.totalorder %s45, %s46
      %p60 = scmp.eq.s32.totalorder %s24, 1
      %p61 = por %p59, %p60
      %p63 = scmp.ne.s32.totalorder %s46, %s62
      %p64 = scmp.eq.s32.totalorder %s24, 0
      %p65 = por %p63, %p64
      %s67 = sadd.s32 %s66, 1
      %p70 = scmp.eq.s32.totalorder %s18, 1
      %p71 = scmp.ne.s32.totalorder %s66, %s68
      %p72 = scmp.eq.s32.totalorder %s18, 0
      %p73 = por %p71, %p72
      %p74 = scmp.ne.s32.totalorder %s66, %s68
      %p75 = scmp.eq.s32.totalorder %s23, 1
      %p76 = por %p74, %p75
      %p77 = scmp.ne.s32.totalorder %s68, %s69
      %p78 = scmp.eq.s32.totalorder %s23, 0
      %p79 = por %p77, %p78
      %p80 = scmp.ne.s32.totalorder %s68, %s69
      %p81 = scmp.eq.s32.totalorder %s24, 1
      %p82 = por %p80, %p81
      %p84 = scmp.ne.s32.totalorder %s69, %s83
      %p85 = scmp.eq.s32.totalorder %s24, 0
      %p86 = por %p84, %p85
      %s88 = sadd.s32 %s87, 1
      %p91 = scmp.eq.s32.totalorder %s18, 1
      %p92 = scmp.ne.s32.totalorder %s87, %s89
      %p93 = scmp.eq.s32.totalorder %s18, 0
      %p94 = por %p92, %p93
      %p95 = scmp.ne.s32.totalorder %s87, %s89
      %p96 = scmp.eq.s32.totalorder %s23, 1
      %p97 = por %p95, %p96
      %p98 = scmp.ne.s32.totalorder %s89, %s90
      %p99 = scmp.eq.s32.totalorder %s23, 0
      %p100 = por %p98, %p99
      %p101 = scmp.ne.s32.totalorder %s89, %s90
      %p102 = scmp.eq.s32.totalorder %s24, 1
      %p103 = por %p101, %p102
      %p105 = scmp.ne.s32.totalorder %s90, %s104
      %p106 = scmp.eq.s32.totalorder %s24, 0
      %p107 = por %p105, %p106
      %s109 = sadd.s32 %s108, 1
      %p112 = scmp.eq.s32.totalorder %s18, 1
      %p113 = scmp.ne.s32.totalorder %s108, %s110
      %p114 = scmp.eq.s32.totalorder %s18, 0
      %p115 = por %p113, %p114
      %p116 = scmp.ne.s32.totalorder %s108, %s110
      %p117 = scmp.eq.s32.totalorder %s23, 1
      %p118 = por %p116, %p117
      %p119 = scmp.ne.s32.totalorder %s110, %s111
      %p120 = scmp.eq.s32.totalorder %s23, 0
      %p121 = por %p119, %p120
      %p122 = scmp.ne.s32.totalorder %s110, %s111
      %p123 = scmp.eq.s32.totalorder %s24, 1
      %p124 = por %p122, %p123
      %p126 = scmp.ne.s32.totalorder %s111, %s125
      %p127 = scmp.eq.s32.totalorder %s24, 0
      %p128 = por %p126, %p127
      %s130 = sadd.s32 %s129, 1
      %p133 = scmp.eq.s32.totalorder %s18, 1
      %p134 = scmp.ne.s32.totalorder %s129, %s131
      %p135 = scmp.eq.s32.totalorder %s18, 0
      %p136 = por %p134, %p135
      %p137 = scmp.ne.s32.totalorder %s129, %s131
      %p138 = scmp.eq.s32.totalorder %s23, 1
      %p139 = por %p137, %p138
      %p140 = scmp.ne.s32.totalorder %s131, %s132
      %p141 = scmp.eq.s32.totalorder %s23, 0
      %p142 = por %p140, %p141
      %p143 = scmp.ne.s32.totalorder %s131, %s132
      %p144 = scmp.eq.s32.totalorder %s24, 1
      %p145 = por %p143, %p144
      %p147 = scmp.ne.s32.totalorder %s132, %s146
      %p148 = scmp.eq.s32.totalorder %s24, 0
      %p149 = por %p147, %p148
      %s150 = ssub.s32 %s25, %s37
      %s151 = ssub.s32 %s26, %s33
      %s152 = sor.u32 %s150, %s151
      %p153 = scmp.eq.s32.totalorder %s152, 0
      %s155 = sadd.s32 %s154, 1
      %s156 = scalar_select %p153, %s154, %s155
      %p159 = pneg %p153
      %p160 = scmp.eq.s32.totalorder %s18, 1
      %p161 = por %p159, %p160
      %p162 = scmp.ne.s32.totalorder %s154, %s157
      %p163 = scmp.eq.s32.totalorder %s18, 0
      %p164 = por %p162, %p163
      %p165 = scmp.ne.s32.totalorder %s154, %s157
      %p166 = scmp.eq.s32.totalorder %s23, 1
      %p167 = por %p165, %p166
      %p168 = scmp.ne.s32.totalorder %s157, %s158
      %p169 = scmp.eq.s32.totalorder %s23, 0
      %p170 = por %p168, %p169
      %p171 = scmp.ne.s32.totalorder %s157, %s158
      %p172 = scmp.eq.s32.totalorder %s24, 1
      %p173 = por %p171, %p172
      %p175 = scmp.ne.s32.totalorder %s158, %s174
      %p176 = scmp.eq.s32.totalorder %s24, 0
      %p177 = por %p175, %p176
      %p178 = scmp.le.s32.totalorder 1, %s18
      %p179 = scmp.lt.s32.totalorder %s18, 3
      %p180 = pnand %p178, %p179
      %p181 = pneg %p180
      // Predicated region
      $region9: #{tpu_custom_call.1} parent=5 // pred_check
        _
      $region10: #{tpu_custom_call.1} parent=5 // pred_check_branch
        %183 = sbr.rel (%p180) target = $region12
      $region11: #{tpu_custom_call.1} parent=5 // pred_region
        %s184 = ssub.s32 %s18, 1
        // Predicated region
        $region13: #{tpu_custom_call.1} parent=11 // pred_check
          %p185 = pneg %p79
        $region14: #{tpu_custom_call.1} parent=11 // pred_check_branch
          %187 = sbr.rel (%p185) target = $region16
        $region15: #{tpu_custom_call.1} parent=11 // pred_region
          _
        $region16: #{tpu_custom_call.1} parent=11 // pred_fallthru
          _
        // Predicated region
        $region17: #{tpu_custom_call.1} parent=11 // pred_check
          %p188 = pneg %p100
        $region18: #{tpu_custom_call.1} parent=11 // pred_check_branch
          %190 = sbr.rel (%p188) target = $region20
        $region19: #{tpu_custom_call.1} parent=11 // pred_region
          _
        $region20: #{tpu_custom_call.1} parent=11 // pred_fallthru
          _
        // Predicated region
        $region21: #{tpu_custom_call.1} parent=11 // pred_check
          %p191 = pneg %p121
        $region22: #{tpu_custom_call.1} parent=11 // pred_check_branch
          %193 = sbr.rel (%p191) target = $region24
        $region23: #{tpu_custom_call.1} parent=11 // pred_region
          %s195 = ssub.s32 2048, 2048
          %196 = vsyncadd [#allocation6], %s195
          %s197 = sshll.u32 [#allocation5], 4
          %s198 = int_to_ptr.vmem [resolvable:$true] %s197
          %203 = dma.hbm_to_vmem [thread:$0]  %s3, 2048, %s198, [#allocation6], 64, 64, 4
        $region24: #{tpu_custom_call.1} parent=11 // pred_fallthru
          _
        // Predicated region
        $region25: #{tpu_custom_call.1} parent=11 // pred_check
          %p204 = pneg %p142
        $region26: #{tpu_custom_call.1} parent=11 // pred_check_branch
          %206 = sbr.rel (%p204) target = $region28
        $region27: #{tpu_custom_call.1} parent=11 // pred_region
          _
        $region28: #{tpu_custom_call.1} parent=11 // pred_fallthru
          _
      $region12: #{tpu_custom_call.1} parent=5 // pred_fallthru
        _
      %p207 = scmp.lt.s32.totalorder %s18, 2
      // Predicated region
      $region29: #{tpu_custom_call.1} parent=5 // pred_check
        %p208 = pneg %p207
      $region30: #{tpu_custom_call.1} parent=5 // pred_check_branch
        %210 = sbr.rel (%p208) target = $region32
      $region31: #{tpu_custom_call.1} parent=5 // pred_region
        // Predicated region
        $region33: #{tpu_custom_call.1} parent=31 // pred_check
          %p211 = pneg %p52
        $region34: #{tpu_custom_call.1} parent=31 // pred_check_branch
          %213 = sbr.rel (%p211) target = $region36
        $region35: #{tpu_custom_call.1} parent=31 // pred_region
          %s214 = sand.u32 %s42, 1
          %s215 = scalar_lea.sflag [#allocation3], %s214
          %s216 = sand.u32 %s42, 1
          %s217 = smul.addr %s216, 768
          %s218 = scalar_lea.vmem [#allocation2], %s217
          %s219 = smul.u32 2, %s26
          %s221 = ssub.s32 12288, 12288
          %222 = vsyncadd %s215, %s221
          %s223 = smul.addr %s25, 192
          %s224 = sadd.s32 %s219, %s223
          %s225 = smul.addr %s224, 64
          %s226 = scalar_lea.hbm %s0, %s225
          %s227 = sshll.u32 %s218, 4
          %s228 = int_to_ptr.vmem [resolvable:$true] %s227
          %233 = dma.hbm_to_vmem [thread:$0]  %s226, 12288, %s228, %s215, 128, 128, 8
        $region36: #{tpu_custom_call.1} parent=31 // pred_fallthru
          _
      $region32: #{tpu_custom_call.1} parent=5 // pred_fallthru
        _
      %p234 = scmp.le.s32.totalorder 1, %s18
      %p235 = scmp.lt.s32.totalorder %s18, 3
      %p236 = pnand %p234, %p235
      %p237 = pneg %p236
      // Predicated region
      $region37: #{tpu_custom_call.1} parent=5 // pred_check
        _
      $region38: #{tpu_custom_call.1} parent=5 // pred_check_branch
        %239 = sbr.rel (%p236) target = $region40
      $region39: #{tpu_custom_call.1} parent=5 // pred_region
        %s240 = ssub.s32 %s18, 1
        %s241 = sand.u32 %s45, 1
        %s242 = scalar_lea.sflag [#allocation3], %s241
        %s243 = sand.u32 %s45, 1
        %s244 = smul.addr %s243, 768
        %s245 = scalar_lea.vmem [#allocation2], %s244
        // Predicated region
        $region41: #{tpu_custom_call.1} parent=39 // pred_check
          %p246 = pneg %p58
        $region42: #{tpu_custom_call.1} parent=39 // pred_check_branch
          %248 = sbr.rel (%p246) target = $region44
        $region43: #{tpu_custom_call.1} parent=39 // pred_region
          %249 = dma.done %s242, 12288
        $region44: #{tpu_custom_call.1} parent=39 // pred_fallthru
          _
        // Predicated region
        $region45: #{tpu_custom_call.1} parent=39 // pred_check
          %p250 = pneg %p121
        $region46: #{tpu_custom_call.1} parent=39 // pred_check_branch
          %252 = sbr.rel (%p250) target = $region48
        $region47: #{tpu_custom_call.1} parent=39 // pred_region
          %253 = dma.done [#allocation6], 2048
        $region48: #{tpu_custom_call.1} parent=39 // pred_fallthru
          _
        %s254 = sand.u32 %s45, 1
        %s255 = scalar_lea.sflag [#allocation3], %s254
        %s256 = sand.u32 %s45, 1
        %s257 = smul.addr %s256, 768
        %s258 = scalar_lea.vmem [#allocation2], %s257
        %p259 = pneg %p58
        %p260 = pneg %p55
        %p261 = pneg %p79
        %p262 = pneg %p76
        %p263 = pneg %p100
        %p264 = pneg %p97
        %p265 = pneg %p121
        %p266 = pneg %p118
        %p267 = pneg %p142
        %p268 = pneg %p139
        %p269 = pneg %p170
        %p270 = pneg %p167
        %s271 = sand.u32 %s157, 1
        %s272 = scalar_lea.sflag [#allocation4], %s271
        %s273 = sand.u32 %s157, 1
        %s274 = smul.addr %s273, 512
        %s275 = scalar_lea.vmem [#allocation7], %s274
        %s276 = smul.u32 2, %s28
        %s277 = smul.u32 2, %s28
        %v279 = vld [vmem:[%s1] sm:$0xff]
        %v280 = vld [vmem:[%s1 + $0x8] sm:$0xff]
        %v281 = vld [vmem:[%s1 + $0x10] sm:$0xff]
        %v282 = vld [vmem:[%s1 + $0x18] sm:$0xff]
        %v283 = vld [vmem:[%s1 + $0x20] sm:$0xff]
        %v284 = vld [vmem:[%s1 + $0x28] sm:$0xff]
        %v285 = vld [vmem:[%s1 + $0x30] sm:$0xff]
        %v286 = vld [vmem:[%s1 + $0x38] sm:$0xff]
        %v287 = vld [vmem:[%s1 + $0x40] sm:$0xff]
        %v288 = vld [vmem:[%s1 + $0x48] sm:$0xff]
        %v289 = vld [vmem:[%s1 + $0x50] sm:$0xff]
        %v290 = vld [vmem:[%s1 + $0x58] sm:$0xff]
        %v291 = vld [vmem:[%s1 + $0x60] sm:$0xff]
        %v292 = vld [vmem:[%s1 + $0x68] sm:$0xff]
        %v293 = vld [vmem:[%s1 + $0x70] sm:$0xff]
        %v294 = vld [vmem:[%s1 + $0x78] sm:$0xff]
        %v295 = vld [vmem:[%s1 + $0x80] sm:$0xff]
        %v296 = vld [vmem:[%s1 + $0x88] sm:$0xff]
        %v297 = vld [vmem:[%s1 + $0x90] sm:$0xff]
        %v298 = vld [vmem:[%s1 + $0x98] sm:$0xff]
        %v299 = vld [vmem:[%s1 + $0xa0] sm:$0xff]
        %v300 = vld [vmem:[%s1 + $0xa8] sm:$0xff]
        %v301 = vld [vmem:[%s1 + $0xb0] sm:$0xff]
        %v302 = vld [vmem:[%s1 + $0xb8] sm:$0xff]
        %v303 = vld [vmem:[%s1 + $0xc0] sm:$0xff]
        %v304 = vld [vmem:[%s1 + $0xc8] sm:$0xff]
        %v305 = vld [vmem:[%s1 + $0xd0] sm:$0xff]
        %v306 = vld [vmem:[%s1 + $0xd8] sm:$0xff]
        %v307 = vld [vmem:[%s1 + $0xe0] sm:$0xff]
        %v308 = vld [vmem:[%s1 + $0xe8] sm:$0xff]
        %v309 = vld [vmem:[%s1 + $0xf0] sm:$0xff]
        %v310 = vld [vmem:[%s1 + $0xf8] sm:$0xff]
        %v311 = vld [vmem:[%s1 + $0x100] sm:$0xff]
        %v312 = vld [vmem:[%s1 + $0x108] sm:$0xff]
        %v313 = vld [vmem:[%s1 + $0x110] sm:$0xff]
        %v314 = vld [vmem:[%s1 + $0x118] sm:$0xff]
        %v315 = vld [vmem:[%s1 + $0x120] sm:$0xff]
        %v316 = vld [vmem:[%s1 + $0x128] sm:$0xff]
        %v317 = vld [vmem:[%s1 + $0x130] sm:$0xff]
        %v318 = vld [vmem:[%s1 + $0x138] sm:$0xff]
        %v319 = vld [vmem:[%s1 + $0x140] sm:$0xff]
        %v320 = vld [vmem:[%s1 + $0x148] sm:$0xff]
        %v321 = vld [vmem:[%s1 + $0x150] sm:$0xff]
        %v322 = vld [vmem:[%s1 + $0x158] sm:$0xff]
        %v323 = vld [vmem:[%s1 + $0x160] sm:$0xff]
        %v324 = vld [vmem:[%s1 + $0x168] sm:$0xff]
        %v325 = vld [vmem:[%s1 + $0x170] sm:$0xff]
        %v326 = vld [vmem:[%s1 + $0x178] sm:$0xff]
        %v327 = vld [vmem:[%s2] sm:$0xff]
        %v328 = vld [vmem:[%s2 + $0x8] sm:$0xff]
        %v329 = vld [vmem:[%s2 + $0x10] sm:$0xff]
        %v330 = vld [vmem:[%s2 + $0x18] sm:$0xff]
        %v331 = vld [vmem:[%s2 + $0x20] sm:$0xff]
        %v332 = vld [vmem:[%s2 + $0x28] sm:$0xff]
        %v333 = vld [vmem:[%s2 + $0x30] sm:$0xff]
        %v334 = vld [vmem:[%s2 + $0x38] sm:$0xff]
        %v335 = vld [vmem:[%s2 + $0x40] sm:$0xff]
        %v336 = vld [vmem:[%s2 + $0x48] sm:$0xff]
        %v337 = vld [vmem:[%s2 + $0x50] sm:$0xff]
        %v338 = vld [vmem:[%s2 + $0x58] sm:$0xff]
        %v339 = vld [vmem:[%s2 + $0x60] sm:$0xff]
        %v340 = vld [vmem:[%s2 + $0x68] sm:$0xff]
        %v341 = vld [vmem:[%s2 + $0x70] sm:$0xff]
        %v342 = vld [vmem:[%s2 + $0x78] sm:$0xff]
        %v343 = vld [vmem:[#allocation5] sm:$0xf]
        %v344 = vld [vmem:[#allocation5 + $0x4] sm:$0xf]
        %v345 = vld [vmem:[#allocation5 + $0x8] sm:$0xf]
        %v346 = vld [vmem:[#allocation5 + $0xc] sm:$0xf]
        %v347 = vld [vmem:[#allocation5 + $0x10] sm:$0xf]
        %v348 = vld [vmem:[#allocation5 + $0x14] sm:$0xf]
        %v349 = vld [vmem:[#allocation5 + $0x18] sm:$0xf]
        %v350 = vld [vmem:[#allocation5 + $0x1c] sm:$0xf]
        %v351 = vld [vmem:[#allocation5 + $0x20] sm:$0xf]
        %v352 = vld [vmem:[#allocation5 + $0x24] sm:$0xf]
        %v353 = vld [vmem:[#allocation5 + $0x28] sm:$0xf]
        %v354 = vld [vmem:[#allocation5 + $0x2c] sm:$0xf]
        %v355 = vld [vmem:[#allocation5 + $0x30] sm:$0xf]
        %v356 = vld [vmem:[#allocation5 + $0x34] sm:$0xf]
        %v357 = vld [vmem:[#allocation5 + $0x38] sm:$0xf]
        %v358 = vld [vmem:[#allocation5 + $0x3c] sm:$0xf]
        %v359 = vld [vmem:[#allocation5 + $0x40] sm:$0xf]
        %v360 = vld [vmem:[#allocation5 + $0x44] sm:$0xf]
        %v361 = vld [vmem:[#allocation5 + $0x48] sm:$0xf]
        %v362 = vld [vmem:[#allocation5 + $0x4c] sm:$0xf]
        %v363 = vld [vmem:[#allocation5 + $0x50] sm:$0xf]
        %v364 = vld [vmem:[#allocation5 + $0x54] sm:$0xf]
        %v365 = vld [vmem:[#allocation5 + $0x58] sm:$0xf]
        %v366 = vld [vmem:[#allocation5 + $0x5c] sm:$0xf]
        %v367 = vld [vmem:[#allocation5 + $0x60] sm:$0xf]
        %v368 = vld [vmem:[#allocation5 + $0x64] sm:$0xf]
        %v369 = vld [vmem:[#allocation5 + $0x68] sm:$0xf]
        %v370 = vld [vmem:[#allocation5 + $0x6c] sm:$0xf]
        %v371 = vld [vmem:[#allocation5 + $0x70] sm:$0xf]
        %v372 = vld [vmem:[#allocation5 + $0x74] sm:$0xf]
        %v373 = vld [vmem:[#allocation5 + $0x78] sm:$0xf]
        %v374 = vld [vmem:[#allocation5 + $0x7c] sm:$0xf]
        %v375 = vld [vmem:[%s4] sm:$0xff]
        %v376 = vld [vmem:[%s4 + $0x8] sm:$0xff]
        %v377 = vld [vmem:[%s4 + $0x10] sm:$0xff]
        %v378 = vld [vmem:[%s4 + $0x18] sm:$0xff]
        %v379 = vld [vmem:[%s4 + $0x20] sm:$0xff]
        %v380 = vld [vmem:[%s4 + $0x28] sm:$0xff]
        %v381 = vld [vmem:[%s4 + $0x30] sm:$0xff]
        %v382 = vld [vmem:[%s4 + $0x38] sm:$0xff]
        %v383 = vld [vmem:[%s4 + $0x40] sm:$0xff]
        %v384 = vld [vmem:[%s4 + $0x48] sm:$0xff]
        %v385 = vld [vmem:[%s4 + $0x50] sm:$0xff]
        %v386 = vld [vmem:[%s4 + $0x58] sm:$0xff]
        %v387 = vld [vmem:[%s4 + $0x60] sm:$0xff]
        %v388 = vld [vmem:[%s4 + $0x68] sm:$0xff]
        %v389 = vld [vmem:[%s4 + $0x70] sm:$0xff]
        %v390 = vld [vmem:[%s4 + $0x78] sm:$0xff]
        %v391 = vld [vmem:[%s4 + $0x80] sm:$0xff]
        %v392 = vld [vmem:[%s4 + $0x88] sm:$0xff]
        %v393 = vld [vmem:[%s4 + $0x90] sm:$0xff]
        %v394 = vld [vmem:[%s4 + $0x98] sm:$0xff]
        %v395 = vld [vmem:[%s4 + $0xa0] sm:$0xff]
        %v396 = vld [vmem:[%s4 + $0xa8] sm:$0xff]
        %v397 = vld [vmem:[%s4 + $0xb0] sm:$0xff]
        %v398 = vld [vmem:[%s4 + $0xb8] sm:$0xff]
        %v399 = vld [vmem:[%s4 + $0xc0] sm:$0xff]
        %v400 = vld [vmem:[%s4 + $0xc8] sm:$0xff]
        %v401 = vld [vmem:[%s4 + $0xd0] sm:$0xff]
        %v402 = vld [vmem:[%s4 + $0xd8] sm:$0xff]
        %v403 = vld [vmem:[%s4 + $0xe0] sm:$0xff]
        %v404 = vld [vmem:[%s4 + $0xe8] sm:$0xff]
        %v405 = vld [vmem:[%s4 + $0xf0] sm:$0xff]
        %v406 = vld [vmem:[%s4 + $0xf8] sm:$0xff]
        %v407 = vld [vmem:[%s245] sm:$0xff]
        %v408 = vld [vmem:[%s245 + $0x8] sm:$0xff]
        %v409 = vld [vmem:[%s245 + $0x10] sm:$0xff]
        %v410 = vld [vmem:[%s245 + $0x18] sm:$0xff]
        %v411 = vld [vmem:[%s245 + $0x20] sm:$0xff]
        %v412 = vld [vmem:[%s245 + $0x28] sm:$0xff]
        %v413 = vld [vmem:[%s245 + $0x30] sm:$0xff]
        %v414 = vld [vmem:[%s245 + $0x38] sm:$0xff]
        %v415 = vld [vmem:[%s245 + $0x40] sm:$0xff]
        %v416 = vld [vmem:[%s245 + $0x48] sm:$0xff]
        %v417 = vld [vmem:[%s245 + $0x50] sm:$0xff]
        %v418 = vld [vmem:[%s245 + $0x58] sm:$0xff]
        %v419 = vld [vmem:[%s245 + $0x60] sm:$0xff]
        %v420 = vld [vmem:[%s245 + $0x68] sm:$0xff]
        %v421 = vld [vmem:[%s245 + $0x70] sm:$0xff]
        %v422 = vld [vmem:[%s245 + $0x78] sm:$0xff]
        %v423 = vld [vmem:[%s245 + $0x80] sm:$0xff]
        %v424 = vld [vmem:[%s245 + $0x88] sm:$0xff]
        %v425 = vld [vmem:[%s245 + $0x90] sm:$0xff]
        %v426 = vld [vmem:[%s245 + $0x98] sm:$0xff]
        %v427 = vld [vmem:[%s245 + $0xa0] sm:$0xff]
        %v428 = vld [vmem:[%s245 + $0xa8] sm:$0xff]
        %v429 = vld [vmem:[%s245 + $0xb0] sm:$0xff]
        %v430 = vld [vmem:[%s245 + $0xb8] sm:$0xff]
        %v431 = vld [vmem:[%s245 + $0xc0] sm:$0xff]
        %v432 = vld [vmem:[%s245 + $0xc8] sm:$0xff]
        %v433 = vld [vmem:[%s245 + $0xd0] sm:$0xff]
        %v434 = vld [vmem:[%s245 + $0xd8] sm:$0xff]
        %v435 = vld [vmem:[%s245 + $0xe0] sm:$0xff]
        %v436 = vld [vmem:[%s245 + $0xe8] sm:$0xff]
        %v437 = vld [vmem:[%s245 + $0xf0] sm:$0xff]
        %v438 = vld [vmem:[%s245 + $0xf8] sm:$0xff]
        %v439 = vld [vmem:[%s245 + $0x100] sm:$0xff]
        %v440 = vld [vmem:[%s245 + $0x108] sm:$0xff]
        %v441 = vld [vmem:[%s245 + $0x110] sm:$0xff]
        %v442 = vld [vmem:[%s245 + $0x118] sm:$0xff]
        %v443 = vld [vmem:[%s245 + $0x120] sm:$0xff]
        %v444 = vld [vmem:[%s245 + $0x128] sm:$0xff]
        %v445 = vld [vmem:[%s245 + $0x130] sm:$0xff]
        %v446 = vld [vmem:[%s245 + $0x138] sm:$0xff]
        %v447 = vld [vmem:[%s245 + $0x140] sm:$0xff]
        %v448 = vld [vmem:[%s245 + $0x148] sm:$0xff]
        %v449 = vld [vmem:[%s245 + $0x150] sm:$0xff]
        %v450 = vld [vmem:[%s245 + $0x158] sm:$0xff]
        %v451 = vld [vmem:[%s245 + $0x160] sm:$0xff]
        %v452 = vld [vmem:[%s245 + $0x168] sm:$0xff]
        %v453 = vld [vmem:[%s245 + $0x170] sm:$0xff]
        %v454 = vld [vmem:[%s245 + $0x178] sm:$0xff]
        %v455 = vld [vmem:[%s245 + $0x180] sm:$0xff]
        %v456 = vld [vmem:[%s245 + $0x188] sm:$0xff]
        %v457 = vld [vmem:[%s245 + $0x190] sm:$0xff]
        %v458 = vld [vmem:[%s245 + $0x198] sm:$0xff]
        %v459 = vld [vmem:[%s245 + $0x1a0] sm:$0xff]
        %v460 = vld [vmem:[%s245 + $0x1a8] sm:$0xff]
        %v461 = vld [vmem:[%s245 + $0x1b0] sm:$0xff]
        %v462 = vld [vmem:[%s245 + $0x1b8] sm:$0xff]
        %v463 = vld [vmem:[%s245 + $0x1c0] sm:$0xff]
        %v464 = vld [vmem:[%s245 + $0x1c8] sm:$0xff]
        %v465 = vld [vmem:[%s245 + $0x1d0] sm:$0xff]
        %v466 = vld [vmem:[%s245 + $0x1d8] sm:$0xff]
        %v467 = vld [vmem:[%s245 + $0x1e0] sm:$0xff]
        %v468 = vld [vmem:[%s245 + $0x1e8] sm:$0xff]
        %v469 = vld [vmem:[%s245 + $0x1f0] sm:$0xff]
        %v470 = vld [vmem:[%s245 + $0x1f8] sm:$0xff]
        %v471 = vld [vmem:[%s245 + $0x200] sm:$0xff]
        %v472 = vld [vmem:[%s245 + $0x208] sm:$0xff]
        %v473 = vld [vmem:[%s245 + $0x210] sm:$0xff]
        %v474 = vld [vmem:[%s245 + $0x218] sm:$0xff]
        %v475 = vld [vmem:[%s245 + $0x220] sm:$0xff]
        %v476 = vld [vmem:[%s245 + $0x228] sm:$0xff]
        %v477 = vld [vmem:[%s245 + $0x230] sm:$0xff]
        %v478 = vld [vmem:[%s245 + $0x238] sm:$0xff]
        %v479 = vld [vmem:[%s245 + $0x240] sm:$0xff]
        %v480 = vld [vmem:[%s245 + $0x248] sm:$0xff]
        %v481 = vld [vmem:[%s245 + $0x250] sm:$0xff]
        %v482 = vld [vmem:[%s245 + $0x258] sm:$0xff]
        %v483 = vld [vmem:[%s245 + $0x260] sm:$0xff]
        %v484 = vld [vmem:[%s245 + $0x268] sm:$0xff]
        %v485 = vld [vmem:[%s245 + $0x270] sm:$0xff]
        %v486 = vld [vmem:[%s245 + $0x278] sm:$0xff]
        %v487 = vld [vmem:[%s245 + $0x280] sm:$0xff]
        %v488 = vld [vmem:[%s245 + $0x288] sm:$0xff]
        %v489 = vld [vmem:[%s245 + $0x290] sm:$0xff]
        %v490 = vld [vmem:[%s245 + $0x298] sm:$0xff]
        %v491 = vld [vmem:[%s245 + $0x2a0] sm:$0xff]
        %v492 = vld [vmem:[%s245 + $0x2a8] sm:$0xff]
        %v493 = vld [vmem:[%s245 + $0x2b0] sm:$0xff]
        %v494 = vld [vmem:[%s245 + $0x2b8] sm:$0xff]
        %v495 = vld [vmem:[%s245 + $0x2c0] sm:$0xff]
        %v496 = vld [vmem:[%s245 + $0x2c8] sm:$0xff]
        %v497 = vld [vmem:[%s245 + $0x2d0] sm:$0xff]
        %v498 = vld [vmem:[%s245 + $0x2d8] sm:$0xff]
        %v499 = vld [vmem:[%s245 + $0x2e0] sm:$0xff]
        %v500 = vld [vmem:[%s245 + $0x2e8] sm:$0xff]
        %v501 = vld [vmem:[%s245 + $0x2f0] sm:$0xff]
        %v502 = vld [vmem:[%s245 + $0x2f8] sm:$0xff]
        %504 = vset.pattern.permute.xlu0 0
        %505 = vperm.xlu0 %504, %v327
        %v506 = vpop.permute.xlu0 %505
        %509 = vset.pattern.permute.xlu0 0
        %510 = vperm.xlu0 %509, %v328
        %v511 = vpop.permute.xlu0 %510
        %514 = vset.pattern.permute.xlu0 0
        %515 = vperm.xlu0 %514, %v329
        %v516 = vpop.permute.xlu0 %515
        %519 = vset.pattern.permute.xlu0 0
        %520 = vperm.xlu0 %519, %v330
        %v521 = vpop.permute.xlu0 %520
        %524 = vset.pattern.permute.xlu0 0
        %525 = vperm.xlu0 %524, %v331
        %v526 = vpop.permute.xlu0 %525
        %529 = vset.pattern.permute.xlu0 0
        %530 = vperm.xlu0 %529, %v332
        %v531 = vpop.permute.xlu0 %530
        %534 = vset.pattern.permute.xlu0 0
        %535 = vperm.xlu0 %534, %v333
        %v536 = vpop.permute.xlu0 %535
        %539 = vset.pattern.permute.xlu0 0
        %540 = vperm.xlu0 %539, %v334
        %v541 = vpop.permute.xlu0 %540
        %544 = vset.pattern.permute.xlu0 0
        %545 = vperm.xlu0 %544, %v335
        %v546 = vpop.permute.xlu0 %545
        %549 = vset.pattern.permute.xlu0 0
        %550 = vperm.xlu0 %549, %v336
        %v551 = vpop.permute.xlu0 %550
        %554 = vset.pattern.permute.xlu0 0
        %555 = vperm.xlu0 %554, %v337
        %v556 = vpop.permute.xlu0 %555
        %559 = vset.pattern.permute.xlu0 0
        %560 = vperm.xlu0 %559, %v338
        %v561 = vpop.permute.xlu0 %560
        %564 = vset.pattern.permute.xlu0 0
        %565 = vperm.xlu0 %564, %v339
        %v566 = vpop.permute.xlu0 %565
        %569 = vset.pattern.permute.xlu0 0
        %570 = vperm.xlu0 %569, %v340
        %v571 = vpop.permute.xlu0 %570
        %574 = vset.pattern.permute.xlu0 0
        %575 = vperm.xlu0 %574, %v341
        %v576 = vpop.permute.xlu0 %575
        %579 = vset.pattern.permute.xlu0 0
        %580 = vperm.xlu0 %579, %v342
        %v581 = vpop.permute.xlu0 %580
        %v631 = vunpack.c.l.b16 %v279
        %v632 = vunpack.c.h.b16 %v279
        %v633 = vunpack.c.l.b16 %v280
        %v634 = vunpack.c.h.b16 %v280
        %v635 = vunpack.c.l.b16 %v281
        %v636 = vunpack.c.h.b16 %v281
        %v637 = vunpack.c.l.b16 %v282
        %v638 = vunpack.c.h.b16 %v282
        %v639 = vunpack.c.l.b16 %v283
        %v640 = vunpack.c.h.b16 %v283
        %v641 = vunpack.c.l.b16 %v284
        %v642 = vunpack.c.h.b16 %v284
        %v643 = vunpack.c.l.b16 %v285
        %v644 = vunpack.c.h.b16 %v285
        %v645 = vunpack.c.l.b16 %v286
        %v646 = vunpack.c.h.b16 %v286
        %v647 = vunpack.c.l.b16 %v287
        %v648 = vunpack.c.h.b16 %v287
        %v649 = vunpack.c.l.b16 %v288
        %v650 = vunpack.c.h.b16 %v288
        %v651 = vunpack.c.l.b16 %v289
        %v652 = vunpack.c.h.b16 %v289
        %v653 = vunpack.c.l.b16 %v290
        %v654 = vunpack.c.h.b16 %v290
        %v655 = vunpack.c.l.b16 %v291
        %v656 = vunpack.c.h.b16 %v291
        %v657 = vunpack.c.l.b16 %v292
        %v658 = vunpack.c.h.b16 %v292
        %v659 = vunpack.c.l.b16 %v293
        %v660 = vunpack.c.h.b16 %v293
        %v661 = vunpack.c.l.b16 %v294
        %v662 = vunpack.c.h.b16 %v294
        %v663 = vunpack.c.l.b16 %v295
        %v664 = vunpack.c.h.b16 %v295
        %v665 = vunpack.c.l.b16 %v296
        %v666 = vunpack.c.h.b16 %v296
        %v667 = vunpack.c.l.b16 %v297
        %v668 = vunpack.c.h.b16 %v297
        %v669 = vunpack.c.l.b16 %v298
        %v670 = vunpack.c.h.b16 %v298
        %v671 = vunpack.c.l.b16 %v299
        %v672 = vunpack.c.h.b16 %v299
        %v673 = vunpack.c.l.b16 %v300
        %v674 = vunpack.c.h.b16 %v300
        %v675 = vunpack.c.l.b16 %v301
        %v676 = vunpack.c.h.b16 %v301
        %v677 = vunpack.c.l.b16 %v302
        %v678 = vunpack.c.h.b16 %v302
        %v679 = vunpack.c.l.b16 %v303
        %v680 = vunpack.c.h.b16 %v303
        %v681 = vunpack.c.l.b16 %v304
        %v682 = vunpack.c.h.b16 %v304
        %v683 = vunpack.c.l.b16 %v305
        %v684 = vunpack.c.h.b16 %v305
        %v685 = vunpack.c.l.b16 %v306
        %v686 = vunpack.c.h.b16 %v306
        %v687 = vunpack.c.l.b16 %v307
        %v688 = vunpack.c.h.b16 %v307
        %v689 = vunpack.c.l.b16 %v308
        %v690 = vunpack.c.h.b16 %v308
        %v691 = vunpack.c.l.b16 %v309
        %v692 = vunpack.c.h.b16 %v309
        %v693 = vunpack.c.l.b16 %v310
        %v694 = vunpack.c.h.b16 %v310
        %v695 = vunpack.c.l.b16 %v311
        %v696 = vunpack.c.h.b16 %v311
        %v697 = vunpack.c.l.b16 %v312
        %v698 = vunpack.c.h.b16 %v312
        %v699 = vunpack.c.l.b16 %v313
        %v700 = vunpack.c.h.b16 %v313
        %v701 = vunpack.c.l.b16 %v314
        %v702 = vunpack.c.h.b16 %v314
        %v703 = vunpack.c.l.b16 %v315
        %v704 = vunpack.c.h.b16 %v315
        %v705 = vunpack.c.l.b16 %v316
        %v706 = vunpack.c.h.b16 %v316
        %v707 = vunpack.c.l.b16 %v317
        %v708 = vunpack.c.h.b16 %v317
        %v709 = vunpack.c.l.b16 %v318
        %v710 = vunpack.c.h.b16 %v318
        %v711 = vunpack.c.l.b16 %v319
        %v712 = vunpack.c.h.b16 %v319
        %v713 = vunpack.c.l.b16 %v320
        %v714 = vunpack.c.h.b16 %v320
        %v715 = vunpack.c.l.b16 %v321
        %v716 = vunpack.c.h.b16 %v321
        %v717 = vunpack.c.l.b16 %v322
        %v718 = vunpack.c.h.b16 %v322
        %v719 = vunpack.c.l.b16 %v323
        %v720 = vunpack.c.h.b16 %v323
        %v721 = vunpack.c.l.b16 %v324
        %v722 = vunpack.c.h.b16 %v324
        %v723 = vunpack.c.l.b16 %v325
        %v724 = vunpack.c.h.b16 %v325
        %v725 = vunpack.c.l.b16 %v326
        %v726 = vunpack.c.h.b16 %v326
        %v727 = vpack.c.b16 %v637, %v631
        %v728 = vpack.c.b16 %v638, %v632
        %v729 = vpack.c.b16 %v639, %v633
        %v730 = vpack.c.b16 %v640, %v634
        %v731 = vpack.c.b16 %v641, %v635
        %v732 = vpack.c.b16 %v642, %v636
        %v733 = vpack.c.b16 %v649, %v643
        %v734 = vpack.c.b16 %v650, %v644
        %v735 = vpack.c.b16 %v651, %v645
        %v736 = vpack.c.b16 %v652, %v646
        %v737 = vpack.c.b16 %v653, %v647
        %v738 = vpack.c.b16 %v654, %v648
        %v739 = vpack.c.b16 %v661, %v655
        %v740 = vpack.c.b16 %v662, %v656
        %v741 = vpack.c.b16 %v663, %v657
        %v742 = vpack.c.b16 %v664, %v658
        %v743 = vpack.c.b16 %v665, %v659
        %v744 = vpack.c.b16 %v666, %v660
        %v745 = vpack.c.b16 %v673, %v667
        %v746 = vpack.c.b16 %v674, %v668
        %v747 = vpack.c.b16 %v675, %v669
        %v748 = vpack.c.b16 %v676, %v670
        %v749 = vpack.c.b16 %v677, %v671
        %v750 = vpack.c.b16 %v678, %v672
        %v751 = vpack.c.b16 %v685, %v679
        %v752 = vpack.c.b16 %v686, %v680
        %v753 = vpack.c.b16 %v687, %v681
        %v754 = vpack.c.b16 %v688, %v682
        %v755 = vpack.c.b16 %v689, %v683
        %v756 = vpack.c.b16 %v690, %v684
        %v757 = vpack.c.b16 %v697, %v691
        %v758 = vpack.c.b16 %v698, %v692
        %v759 = vpack.c.b16 %v699, %v693
        %v760 = vpack.c.b16 %v700, %v694
        %v761 = vpack.c.b16 %v701, %v695
        %v762 = vpack.c.b16 %v702, %v696
        %v763 = vpack.c.b16 %v709, %v703
        %v764 = vpack.c.b16 %v710, %v704
        %v765 = vpack.c.b16 %v711, %v705
        %v766 = vpack.c.b16 %v712, %v706
        %v767 = vpack.c.b16 %v713, %v707
        %v768 = vpack.c.b16 %v714, %v708
        %v769 = vpack.c.b16 %v721, %v715
        %v770 = vpack.c.b16 %v722, %v716
        %v771 = vpack.c.b16 %v723, %v717
        %v772 = vpack.c.b16 %v724, %v718
        %v773 = vpack.c.b16 %v725, %v719
        %v774 = vpack.c.b16 %v726, %v720
        %v919 = vunpack.c.l.b16 %v407
        %v920 = vunpack.c.h.b16 %v407
        %v921 = vunpack.c.l.b16 %v408
        %v922 = vunpack.c.h.b16 %v408
        %v923 = vunpack.c.l.b16 %v409
        %v924 = vunpack.c.h.b16 %v409
        %v925 = vunpack.c.l.b16 %v410
        %v926 = vunpack.c.h.b16 %v410
        %v927 = vunpack.c.l.b16 %v411
        %v928 = vunpack.c.h.b16 %v411
        %v929 = vunpack.c.l.b16 %v412
        %v930 = vunpack.c.h.b16 %v412
        %v931 = vunpack.c.l.b16 %v413
        %v932 = vunpack.c.h.b16 %v413
        %v933 = vunpack.c.l.b16 %v414
        %v934 = vunpack.c.h.b16 %v414
        %v935 = vunpack.c.l.b16 %v415
        %v936 = vunpack.c.h.b16 %v415
        %v937 = vunpack.c.l.b16 %v416
        %v938 = vunpack.c.h.b16 %v416
        %v939 = vunpack.c.l.b16 %v417
        %v940 = vunpack.c.h.b16 %v417
        %v941 = vunpack.c.l.b16 %v418
        %v942 = vunpack.c.h.b16 %v418
        %v943 = vunpack.c.l.b16 %v419
        %v944 = vunpack.c.h.b16 %v419
        %v945 = vunpack.c.l.b16 %v420
        %v946 = vunpack.c.h.b16 %v420
        %v947 = vunpack.c.l.b16 %v421
        %v948 = vunpack.c.h.b16 %v421
        %v949 = vunpack.c.l.b16 %v422
        %v950 = vunpack.c.h.b16 %v422
        %v951 = vunpack.c.l.b16 %v423
        %v952 = vunpack.c.h.b16 %v423
        %v953 = vunpack.c.l.b16 %v424
        %v954 = vunpack.c.h.b16 %v424
        %v955 = vunpack.c.l.b16 %v425
        %v956 = vunpack.c.h.b16 %v425
        %v957 = vunpack.c.l.b16 %v426
        %v958 = vunpack.c.h.b16 %v426
        %v959 = vunpack.c.l.b16 %v427
        %v960 = vunpack.c.h.b16 %v427
        %v961 = vunpack.c.l.b16 %v428
        %v962 = vunpack.c.h.b16 %v428
        %v963 = vunpack.c.l.b16 %v429
        %v964 = vunpack.c.h.b16 %v429
        %v965 = vunpack.c.l.b16 %v430
        %v966 = vunpack.c.h.b16 %v430
        %v967 = vunpack.c.l.b16 %v431
        %v968 = vunpack.c.h.b16 %v431
        %v969 = vunpack.c.l.b16 %v432
        %v970 = vunpack.c.h.b16 %v432
        %v971 = vunpack.c.l.b16 %v433
        %v972 = vunpack.c.h.b16 %v433
        %v973 = vunpack.c.l.b16 %v434
        %v974 = vunpack.c.h.b16 %v434
        %v975 = vunpack.c.l.b16 %v435
        %v976 = vunpack.c.h.b16 %v435
        %v977 = vunpack.c.l.b16 %v436
        %v978 = vunpack.c.h.b16 %v436
        %v979 = vunpack.c.l.b16 %v437
        %v980 = vunpack.c.h.b16 %v437
        %v981 = vunpack.c.l.b16 %v438
        %v982 = vunpack.c.h.b16 %v438
        %v983 = vunpack.c.l.b16 %v439
        %v984 = vunpack.c.h.b16 %v439
        %v985 = vunpack.c.l.b16 %v440
        %v986 = vunpack.c.h.b16 %v440
        %v987 = vunpack.c.l.b16 %v441
        %v988 = vunpack.c.h.b16 %v441
        %v989 = vunpack.c.l.b16 %v442
        %v990 = vunpack.c.h.b16 %v442
        %v991 = vunpack.c.l.b16 %v443
        %v992 = vunpack.c.h.b16 %v443
        %v993 = vunpack.c.l.b16 %v444
        %v994 = vunpack.c.h.b16 %v444
        %v995 = vunpack.c.l.b16 %v445
        %v996 = vunpack.c.h.b16 %v445
        %v997 = vunpack.c.l.b16 %v446
        %v998 = vunpack.c.h.b16 %v446
        %v999 = vunpack.c.l.b16 %v447
        %v1000 = vunpack.c.h.b16 %v447
        %v1001 = vunpack.c.l.b16 %v448
        %v1002 = vunpack.c.h.b16 %v448
        %v1003 = vunpack.c.l.b16 %v449
        %v1004 = vunpack.c.h.b16 %v449
        %v1005 = vunpack.c.l.b16 %v450
        %v1006 = vunpack.c.h.b16 %v450
        %v1007 = vunpack.c.l.b16 %v451
        %v1008 = vunpack.c.h.b16 %v451
        %v1009 = vunpack.c.l.b16 %v452
        %v1010 = vunpack.c.h.b16 %v452
        %v1011 = vunpack.c.l.b16 %v453
        %v1012 = vunpack.c.h.b16 %v453
        %v1013 = vunpack.c.l.b16 %v454
        %v1014 = vunpack.c.h.b16 %v454
        %v1015 = vunpack.c.l.b16 %v455
        %v1016 = vunpack.c.h.b16 %v455
        %v1017 = vunpack.c.l.b16 %v456
        %v1018 = vunpack.c.h.b16 %v456
        %v1019 = vunpack.c.l.b16 %v457
        %v1020 = vunpack.c.h.b16 %v457
        %v1021 = vunpack.c.l.b16 %v458
        %v1022 = vunpack.c.h.b16 %v458
        %v1023 = vunpack.c.l.b16 %v459
        %v1024 = vunpack.c.h.b16 %v459
        %v1025 = vunpack.c.l.b16 %v460
        %v1026 = vunpack.c.h.b16 %v460
        %v1027 = vunpack.c.l.b16 %v461
        %v1028 = vunpack.c.h.b16 %v461
        %v1029 = vunpack.c.l.b16 %v462
        %v1030 = vunpack.c.h.b16 %v462
        %v1031 = vunpack.c.l.b16 %v463
        %v1032 = vunpack.c.h.b16 %v463
        %v1033 = vunpack.c.l.b16 %v464
        %v1034 = vunpack.c.h.b16 %v464
        %v1035 = vunpack.c.l.b16 %v465
        %v1036 = vunpack.c.h.b16 %v465
        %v1037 = vunpack.c.l.b16 %v466
        %v1038 = vunpack.c.h.b16 %v466
        %v1039 = vunpack.c.l.b16 %v467
        %v1040 = vunpack.c.h.b16 %v467
        %v1041 = vunpack.c.l.b16 %v468
        %v1042 = vunpack.c.h.b16 %v468
        %v1043 = vunpack.c.l.b16 %v469
        %v1044 = vunpack.c.h.b16 %v469
        %v1045 = vunpack.c.l.b16 %v470
        %v1046 = vunpack.c.h.b16 %v470
        %v1047 = vunpack.c.l.b16 %v471
        %v1048 = vunpack.c.h.b16 %v471
        %v1049 = vunpack.c.l.b16 %v472
        %v1050 = vunpack.c.h.b16 %v472
        %v1051 = vunpack.c.l.b16 %v473
        %v1052 = vunpack.c.h.b16 %v473
        %v1053 = vunpack.c.l.b16 %v474
        %v1054 = vunpack.c.h.b16 %v474
        %v1055 = vunpack.c.l.b16 %v475
        %v1056 = vunpack.c.h.b16 %v475
        %v1057 = vunpack.c.l.b16 %v476
        %v1058 = vunpack.c.h.b16 %v476
        %v1059 = vunpack.c.l.b16 %v477
        %v1060 = vunpack.c.h.b16 %v477
        %v1061 = vunpack.c.l.b16 %v478
        %v1062 = vunpack.c.h.b16 %v478
        %v1063 = vunpack.c.l.b16 %v479
        %v1064 = vunpack.c.h.b16 %v479
        %v1065 = vunpack.c.l.b16 %v480
        %v1066 = vunpack.c.h.b16 %v480
        %v1067 = vunpack.c.l.b16 %v481
        %v1068 = vunpack.c.h.b16 %v481
        %v1069 = vunpack.c.l.b16 %v482
        %v1070 = vunpack.c.h.b16 %v482
        %v1071 = vunpack.c.l.b16 %v483
        %v1072 = vunpack.c.h.b16 %v483
        %v1073 = vunpack.c.l.b16 %v484
        %v1074 = vunpack.c.h.b16 %v484
        %v1075 = vunpack.c.l.b16 %v485
        %v1076 = vunpack.c.h.b16 %v485
        %v1077 = vunpack.c.l.b16 %v486
        %v1078 = vunpack.c.h.b16 %v486
        %v1079 = vunpack.c.l.b16 %v487
        %v1080 = vunpack.c.h.b16 %v487
        %v1081 = vunpack.c.l.b16 %v488
        %v1082 = vunpack.c.h.b16 %v488
        %v1083 = vunpack.c.l.b16 %v489
        %v1084 = vunpack.c.h.b16 %v489
        %v1085 = vunpack.c.l.b16 %v490
        %v1086 = vunpack.c.h.b16 %v490
        %v1087 = vunpack.c.l.b16 %v491
        %v1088 = vunpack.c.h.b16 %v491
        %v1089 = vunpack.c.l.b16 %v492
        %v1090 = vunpack.c.h.b16 %v492
        %v1091 = vunpack.c.l.b16 %v493
        %v1092 = vunpack.c.h.b16 %v493
        %v1093 = vunpack.c.l.b16 %v494
        %v1094 = vunpack.c.h.b16 %v494
        %v1095 = vunpack.c.l.b16 %v495
        %v1096 = vunpack.c.h.b16 %v495
        %v1097 = vunpack.c.l.b16 %v496
        %v1098 = vunpack.c.h.b16 %v496
        %v1099 = vunpack.c.l.b16 %v497
        %v1100 = vunpack.c.h.b16 %v497
        %v1101 = vunpack.c.l.b16 %v498
        %v1102 = vunpack.c.h.b16 %v498
        %v1103 = vunpack.c.l.b16 %v499
        %v1104 = vunpack.c.h.b16 %v499
        %v1105 = vunpack.c.l.b16 %v500
        %v1106 = vunpack.c.h.b16 %v500
        %v1107 = vunpack.c.l.b16 %v501
        %v1108 = vunpack.c.h.b16 %v501
        %v1109 = vunpack.c.l.b16 %v502
        %v1110 = vunpack.c.h.b16 %v502
        %v1111 = vpack.c.b16 %v921, %v919
        %v1112 = vpack.c.b16 %v922, %v920
        %v1113 = vpack.c.b16 %v925, %v923
        %v1114 = vpack.c.b16 %v926, %v924
        %v1115 = vpack.c.b16 %v929, %v927
        %v1116 = vpack.c.b16 %v930, %v928
        %v1117 = vpack.c.b16 %v933, %v931
        %v1118 = vpack.c.b16 %v934, %v932
        %v1119 = vpack.c.b16 %v937, %v935
        %v1120 = vpack.c.b16 %v938, %v936
        %v1121 = vpack.c.b16 %v941, %v939
        %v1122 = vpack.c.b16 %v942, %v940
        %v1123 = vpack.c.b16 %v945, %v943
        %v1124 = vpack.c.b16 %v946, %v944
        %v1125 = vpack.c.b16 %v949, %v947
        %v1126 = vpack.c.b16 %v950, %v948
        %v1127 = vpack.c.b16 %v953, %v951
        %v1128 = vpack.c.b16 %v954, %v952
        %v1129 = vpack.c.b16 %v957, %v955
        %v1130 = vpack.c.b16 %v958, %v956
        %v1131 = vpack.c.b16 %v961, %v959
        %v1132 = vpack.c.b16 %v962, %v960
        %v1133 = vpack.c.b16 %v965, %v963
        %v1134 = vpack.c.b16 %v966, %v964
        %v1135 = vpack.c.b16 %v969, %v967
        %v1136 = vpack.c.b16 %v970, %v968
        %v1137 = vpack.c.b16 %v973, %v971
        %v1138 = vpack.c.b16 %v974, %v972
        %v1139 = vpack.c.b16 %v977, %v975
        %v1140 = vpack.c.b16 %v978, %v976
        %v1141 = vpack.c.b16 %v981, %v979
        %v1142 = vpack.c.b16 %v982, %v980
        %v1143 = vpack.c.b16 %v985, %v983
        %v1144 = vpack.c.b16 %v986, %v984
        %v1145 = vpack.c.b16 %v989, %v987
        %v1146 = vpack.c.b16 %v990, %v988
        %v1147 = vpack.c.b16 %v993, %v991
        %v1148 = vpack.c.b16 %v994, %v992
        %v1149 = vpack.c.b16 %v997, %v995
        %v1150 = vpack.c.b16 %v998, %v996
        %v1151 = vpack.c.b16 %v1001, %v999
        %v1152 = vpack.c.b16 %v1002, %v1000
        %v1153 = vpack.c.b16 %v1005, %v1003
        %v1154 = vpack.c.b16 %v1006, %v1004
        %v1155 = vpack.c.b16 %v1009, %v1007
        %v1156 = vpack.c.b16 %v1010, %v1008
        %v1157 = vpack.c.b16 %v1013, %v1011
        %v1158 = vpack.c.b16 %v1014, %v1012
        %v1159 = vpack.c.b16 %v1017, %v1015
        %v1160 = vpack.c.b16 %v1018, %v1016
        %v1161 = vpack.c.b16 %v1021, %v1019
        %v1162 = vpack.c.b16 %v1022, %v1020
        %v1163 = vpack.c.b16 %v1025, %v1023
        %v1164 = vpack.c.b16 %v1026, %v1024
        %v1165 = vpack.c.b16 %v1029, %v1027
        %v1166 = vpack.c.b16 %v1030, %v1028
        %v1167 = vpack.c.b16 %v1033, %v1031
        %v1168 = vpack.c.b16 %v1034, %v1032
        %v1169 = vpack.c.b16 %v1037, %v1035
        %v1170 = vpack.c.b16 %v1038, %v1036
        %v1171 = vpack.c.b16 %v1041, %v1039
        %v1172 = vpack.c.b16 %v1042, %v1040
        %v1173 = vpack.c.b16 %v1045, %v1043
        %v1174 = vpack.c.b16 %v1046, %v1044
        %v1175 = vpack.c.b16 %v1049, %v1047
        %v1176 = vpack.c.b16 %v1050, %v1048
        %v1177 = vpack.c.b16 %v1053, %v1051
        %v1178 = vpack.c.b16 %v1054, %v1052
        %v1179 = vpack.c.b16 %v1057, %v1055
        %v1180 = vpack.c.b16 %v1058, %v1056
        %v1181 = vpack.c.b16 %v1061, %v1059
        %v1182 = vpack.c.b16 %v1062, %v1060
        %v1183 = vpack.c.b16 %v1065, %v1063
        %v1184 = vpack.c.b16 %v1066, %v1064
        %v1185 = vpack.c.b16 %v1069, %v1067
        %v1186 = vpack.c.b16 %v1070, %v1068
        %v1187 = vpack.c.b16 %v1073, %v1071
        %v1188 = vpack.c.b16 %v1074, %v1072
        %v1189 = vpack.c.b16 %v1077, %v1075
        %v1190 = vpack.c.b16 %v1078, %v1076
        %v1191 = vpack.c.b16 %v1081, %v1079
        %v1192 = vpack.c.b16 %v1082, %v1080
        %v1193 = vpack.c.b16 %v1085, %v1083
        %v1194 = vpack.c.b16 %v1086, %v1084
        %v1195 = vpack.c.b16 %v1089, %v1087
        %v1196 = vpack.c.b16 %v1090, %v1088
        %v1197 = vpack.c.b16 %v1093, %v1091
        %v1198 = vpack.c.b16 %v1094, %v1092
        %v1199 = vpack.c.b16 %v1097, %v1095
        %v1200 = vpack.c.b16 %v1098, %v1096
        %v1201 = vpack.c.b16 %v1101, %v1099
        %v1202 = vpack.c.b16 %v1102, %v1100
        %v1203 = vpack.c.b16 %v1105, %v1103
        %v1204 = vpack.c.b16 %v1106, %v1104
        %v1205 = vpack.c.b16 %v1109, %v1107
        %v1206 = vpack.c.b16 %v1110, %v1108
        %1303 = vmatprep.subr.bf16.mxu0 %v1126
        %1304 = vmatpush1.bf16.msra.mxu0 %v1125
        %1305 = vmatprep.subr.bf16.mxu0 %v1124
        %1306 = vmatpush1.bf16.msra.mxu0 %v1123
        %1307 = vmatprep.subr.bf16.mxu0 %v1122
        %1308 = vmatpush1.bf16.msra.mxu0 %v1121
        %1309 = vmatprep.subr.bf16.mxu0 %v1120
        %1310 = vmatpush1.bf16.msra.mxu0 %v1119
        %1311 = vmatprep.subr.bf16.mxu0 %v1118
        %1312 = vmatpush1.bf16.msra.mxu0 %v1117
        %1313 = vmatprep.subr.bf16.mxu0 %v1116
        %1314 = vmatpush1.bf16.msra.mxu0 %v1115
        %1315 = vmatprep.subr.bf16.mxu0 %v1114
        %1316 = vmatpush1.bf16.msra.mxu0 %v1113
        %1317 = vmatprep.subr.bf16.mxu0 %v1112
        %1318 = vmatpush1.bf16.msra.mxu0 %v1111
        %1319 = vmatprep.subr.bf16.mxu0 %v1142
        %1320 = vmatpush2.bf16.msra.mxu0 %v1141
        %1321 = vmatprep.subr.bf16.mxu0 %v1140
        %1322 = vmatpush2.bf16.msra.mxu0 %v1139
        %1323 = vmatprep.subr.bf16.mxu0 %v1138
        %1324 = vmatpush2.bf16.msra.mxu0 %v1137
        %1325 = vmatprep.subr.bf16.mxu0 %v1136
        %1326 = vmatpush2.bf16.msra.mxu0 %v1135
        %1327 = vmatprep.subr.bf16.mxu0 %v1134
        %1328 = vmatpush2.bf16.msra.mxu0 %v1133
        %1329 = vmatprep.subr.bf16.mxu0 %v1132
        %1330 = vmatpush2.bf16.msra.mxu0 %v1131
        %1331 = vmatprep.subr.bf16.mxu0 %v1130
        %1332 = vmatpush2.bf16.msra.mxu0 %v1129
        %1333 = vmatprep.subr.bf16.mxu0 %v1128
        %1334 = vmatpush2.bf16.msra.mxu0 %v1127
        %1335 = vmatprep.mubr.bf16.mxu0 %v728
        %1336 = vmatmul.mubr.bf16.gmra.mxu0 %v727
        %v1337 = vpop.f32.mrf.mxu0
        %v1338 = vadd.f32 %v506, %v1337
        %v1339 = vpop.f32.mrf.mxu0
        %v1340 = vadd.f32 %v506, %v1339
        %v1341 = vpop.f32.mrf.mxu0
        %v1342 = vadd.f32 %v511, %v1341
        %v1343 = vpop.f32.mrf.mxu0
        %v1344 = vadd.f32 %v511, %v1343
        %1345 = vmatprep.mubr.bf16.mxu0 %v734
        %1346 = vmatmul.mubr.bf16.gmra.mxu0 %v733
        %v1347 = vpop.f32.mrf.mxu0
        %v1348 = vadd.f32 %v516, %v1347
        %v1349 = vpop.f32.mrf.mxu0
        %v1350 = vadd.f32 %v516, %v1349
        %v1351 = vpop.f32.mrf.mxu0
        %v1352 = vadd.f32 %v521, %v1351
        %v1353 = vpop.f32.mrf.mxu0
        %v1354 = vadd.f32 %v521, %v1353
        %1355 = vmatprep.mubr.bf16.mxu0 %v740
        %1356 = vmatmul.mubr.bf16.gmra.mxu0 %v739
        %v1357 = vpop.f32.mrf.mxu0
        %v1358 = vadd.f32 %v526, %v1357
        %v1359 = vpop.f32.mrf.mxu0
        %v1360 = vadd.f32 %v526, %v1359
        %v1361 = vpop.f32.mrf.mxu0
        %v1362 = vadd.f32 %v531, %v1361
        %v1363 = vpop.f32.mrf.mxu0
        %v1364 = vadd.f32 %v531, %v1363
        %1365 = vmatprep.mubr.bf16.mxu0 %v746
        %1366 = vmatmul.mubr.bf16.gmra.mxu0 %v745
        %v1367 = vpop.f32.mrf.mxu0
        %v1368 = vadd.f32 %v536, %v1367
        %v1369 = vpop.f32.mrf.mxu0
        %v1370 = vadd.f32 %v536, %v1369
        %v1371 = vpop.f32.mrf.mxu0
        %v1372 = vadd.f32 %v541, %v1371
        %v1373 = vpop.f32.mrf.mxu0
        %v1374 = vadd.f32 %v541, %v1373
        %1375 = vmatprep.mubr.bf16.mxu0 %v752
        %1376 = vmatmul.mubr.bf16.gmra.mxu0 %v751
        %v1377 = vpop.f32.mrf.mxu0
        %v1378 = vadd.f32 %v546, %v1377
        %v1379 = vpop.f32.mrf.mxu0
        %v1380 = vadd.f32 %v546, %v1379
        %v1381 = vpop.f32.mrf.mxu0
        %v1382 = vadd.f32 %v551, %v1381
        %v1383 = vpop.f32.mrf.mxu0
        %v1384 = vadd.f32 %v551, %v1383
        %1385 = vmatprep.mubr.bf16.mxu0 %v758
        %1386 = vmatmul.mubr.bf16.gmra.mxu0 %v757
        %v1387 = vpop.f32.mrf.mxu0
        %v1388 = vadd.f32 %v556, %v1387
        %v1389 = vpop.f32.mrf.mxu0
        %v1390 = vadd.f32 %v556, %v1389
        %v1391 = vpop.f32.mrf.mxu0
        %v1392 = vadd.f32 %v561, %v1391
        %v1393 = vpop.f32.mrf.mxu0
        %v1394 = vadd.f32 %v561, %v1393
        %1395 = vmatprep.mubr.bf16.mxu0 %v764
        %1396 = vmatmul.mubr.bf16.gmra.mxu0 %v763
        %v1397 = vpop.f32.mrf.mxu0
        %v1398 = vadd.f32 %v566, %v1397
        %v1399 = vpop.f32.mrf.mxu0
        %v1400 = vadd.f32 %v566, %v1399
        %v1401 = vpop.f32.mrf.mxu0
        %v1402 = vadd.f32 %v571, %v1401
        %v1403 = vpop.f32.mrf.mxu0
        %v1404 = vadd.f32 %v571, %v1403
        %1405 = vmatprep.mubr.bf16.mxu0 %v770
        %1406 = vmatmul.mubr.bf16.gmra.mxu0 %v769
        %v1407 = vpop.f32.mrf.mxu0
        %v1408 = vadd.f32 %v576, %v1407
        %v1409 = vpop.f32.mrf.mxu0
        %v1410 = vadd.f32 %v576, %v1409
        %v1411 = vpop.f32.mrf.mxu0
        %v1412 = vadd.f32 %v581, %v1411
        %v1413 = vpop.f32.mrf.mxu0
        %v1414 = vadd.f32 %v581, %v1413
        %1415 = vdwg.mxu0
        %1416 = vmatprep.subr.bf16.mxu0 %v1158
        %1417 = vmatpush1.bf16.msra.mxu0 %v1157
        %1418 = vmatprep.subr.bf16.mxu0 %v1156
        %1419 = vmatpush1.bf16.msra.mxu0 %v1155
        %1420 = vmatprep.subr.bf16.mxu0 %v1154
        %1421 = vmatpush1.bf16.msra.mxu0 %v1153
        %1422 = vmatprep.subr.bf16.mxu0 %v1152
        %1423 = vmatpush1.bf16.msra.mxu0 %v1151
        %1424 = vmatprep.subr.bf16.mxu0 %v1150
        %1425 = vmatpush1.bf16.msra.mxu0 %v1149
        %1426 = vmatprep.subr.bf16.mxu0 %v1148
        %1427 = vmatpush1.bf16.msra.mxu0 %v1147
        %1428 = vmatprep.subr.bf16.mxu0 %v1146
        %1429 = vmatpush1.bf16.msra.mxu0 %v1145
        %1430 = vmatprep.subr.bf16.mxu0 %v1144
        %1431 = vmatpush1.bf16.msra.mxu0 %v1143
        %1432 = vmatprep.subr.bf16.mxu0 %v1174
        %1433 = vmatpush2.bf16.msra.mxu0 %v1173
        %1434 = vmatprep.subr.bf16.mxu0 %v1172
        %1435 = vmatpush2.bf16.msra.mxu0 %v1171
        %1436 = vmatprep.subr.bf16.mxu0 %v1170
        %1437 = vmatpush2.bf16.msra.mxu0 %v1169
        %1438 = vmatprep.subr.bf16.mxu0 %v1168
        %1439 = vmatpush2.bf16.msra.mxu0 %v1167
        %1440 = vmatprep.subr.bf16.mxu0 %v1166
        %1441 = vmatpush2.bf16.msra.mxu0 %v1165
        %1442 = vmatprep.subr.bf16.mxu0 %v1164
        %1443 = vmatpush2.bf16.msra.mxu0 %v1163
        %1444 = vmatprep.subr.bf16.mxu0 %v1162
        %1445 = vmatpush2.bf16.msra.mxu0 %v1161
        %1446 = vmatprep.subr.bf16.mxu0 %v1160
        %1447 = vmatpush2.bf16.msra.mxu0 %v1159
        %1448 = vmatprep.mubr.bf16.mxu0 %v730
        %1449 = vmatmul.mubr.bf16.gmra.mxu0 %v729
        %v1450 = vpop.f32.mrf.mxu0
        %v1451 = vadd.f32 %v1338, %v1450
        %v1452 = vpop.f32.mrf.mxu0
        %v1453 = vadd.f32 %v1340, %v1452
        %v1454 = vpop.f32.mrf.mxu0
        %v1455 = vadd.f32 %v1342, %v1454
        %v1456 = vpop.f32.mrf.mxu0
        %v1457 = vadd.f32 %v1344, %v1456
        %1458 = vmatprep.mubr.bf16.mxu0 %v736
        %1459 = vmatmul.mubr.bf16.gmra.mxu0 %v735
        %v1460 = vpop.f32.mrf.mxu0
        %v1461 = vadd.f32 %v1348, %v1460
        %v1462 = vpop.f32.mrf.mxu0
        %v1463 = vadd.f32 %v1350, %v1462
        %v1464 = vpop.f32.mrf.mxu0
        %v1465 = vadd.f32 %v1352, %v1464
        %v1466 = vpop.f32.mrf.mxu0
        %v1467 = vadd.f32 %v1354, %v1466
        %1468 = vmatprep.mubr.bf16.mxu0 %v742
        %1469 = vmatmul.mubr.bf16.gmra.mxu0 %v741
        %v1470 = vpop.f32.mrf.mxu0
        %v1471 = vadd.f32 %v1358, %v1470
        %v1472 = vpop.f32.mrf.mxu0
        %v1473 = vadd.f32 %v1360, %v1472
        %v1474 = vpop.f32.mrf.mxu0
        %v1475 = vadd.f32 %v1362, %v1474
        %v1476 = vpop.f32.mrf.mxu0
        %v1477 = vadd.f32 %v1364, %v1476
        %1478 = vmatprep.mubr.bf16.mxu0 %v748
        %1479 = vmatmul.mubr.bf16.gmra.mxu0 %v747
        %v1480 = vpop.f32.mrf.mxu0
        %v1481 = vadd.f32 %v1368, %v1480
        %v1482 = vpop.f32.mrf.mxu0
        %v1483 = vadd.f32 %v1370, %v1482
        %v1484 = vpop.f32.mrf.mxu0
        %v1485 = vadd.f32 %v1372, %v1484
        %v1486 = vpop.f32.mrf.mxu0
        %v1487 = vadd.f32 %v1374, %v1486
        %1488 = vmatprep.mubr.bf16.mxu0 %v754
        %1489 = vmatmul.mubr.bf16.gmra.mxu0 %v753
        %v1490 = vpop.f32.mrf.mxu0
        %v1491 = vadd.f32 %v1378, %v1490
        %v1492 = vpop.f32.mrf.mxu0
        %v1493 = vadd.f32 %v1380, %v1492
        %v1494 = vpop.f32.mrf.mxu0
        %v1495 = vadd.f32 %v1382, %v1494
        %v1496 = vpop.f32.mrf.mxu0
        %v1497 = vadd.f32 %v1384, %v1496
        %1498 = vmatprep.mubr.bf16.mxu0 %v760
        %1499 = vmatmul.mubr.bf16.gmra.mxu0 %v759
        %v1500 = vpop.f32.mrf.mxu0
        %v1501 = vadd.f32 %v1388, %v1500
        %v1502 = vpop.f32.mrf.mxu0
        %v1503 = vadd.f32 %v1390, %v1502
        %v1504 = vpop.f32.mrf.mxu0
        %v1505 = vadd.f32 %v1392, %v1504
        %v1506 = vpop.f32.mrf.mxu0
        %v1507 = vadd.f32 %v1394, %v1506
        %1508 = vmatprep.mubr.bf16.mxu0 %v766
        %1509 = vmatmul.mubr.bf16.gmra.mxu0 %v765
        %v1510 = vpop.f32.mrf.mxu0
        %v1511 = vadd.f32 %v1398, %v1510
        %v1512 = vpop.f32.mrf.mxu0
        %v1513 = vadd.f32 %v1400, %v1512
        %v1514 = vpop.f32.mrf.mxu0
        %v1515 = vadd.f32 %v1402, %v1514
        %v1516 = vpop.f32.mrf.mxu0
        %v1517 = vadd.f32 %v1404, %v1516
        %1518 = vmatprep.mubr.bf16.mxu0 %v772
        %1519 = vmatmul.mubr.bf16.gmra.mxu0 %v771
        %v1520 = vpop.f32.mrf.mxu0
        %v1521 = vadd.f32 %v1408, %v1520
        %v1522 = vpop.f32.mrf.mxu0
        %v1523 = vadd.f32 %v1410, %v1522
        %v1524 = vpop.f32.mrf.mxu0
        %v1525 = vadd.f32 %v1412, %v1524
        %v1526 = vpop.f32.mrf.mxu0
        %v1527 = vadd.f32 %v1414, %v1526
        %1528 = vdwg.mxu0
        %1529 = vmatprep.subr.bf16.mxu0 %v1190
        %1530 = vmatpush1.bf16.msra.mxu0 %v1189
        %1531 = vmatprep.subr.bf16.mxu0 %v1188
        %1532 = vmatpush1.bf16.msra.mxu0 %v1187
        %1533 = vmatprep.subr.bf16.mxu0 %v1186
        %1534 = vmatpush1.bf16.msra.mxu0 %v1185
        %1535 = vmatprep.subr.bf16.mxu0 %v1184
        %1536 = vmatpush1.bf16.msra.mxu0 %v1183
        %1537 = vmatprep.subr.bf16.mxu0 %v1182
        %1538 = vmatpush1.bf16.msra.mxu0 %v1181
        %1539 = vmatprep.subr.bf16.mxu0 %v1180
        %1540 = vmatpush1.bf16.msra.mxu0 %v1179
        %1541 = vmatprep.subr.bf16.mxu0 %v1178
        %1542 = vmatpush1.bf16.msra.mxu0 %v1177
        %1543 = vmatprep.subr.bf16.mxu0 %v1176
        %1544 = vmatpush1.bf16.msra.mxu0 %v1175
        %1545 = vmatprep.subr.bf16.mxu0 %v1206
        %1546 = vmatpush2.bf16.msra.mxu0 %v1205
        %1547 = vmatprep.subr.bf16.mxu0 %v1204
        %1548 = vmatpush2.bf16.msra.mxu0 %v1203
        %1549 = vmatprep.subr.bf16.mxu0 %v1202
        %1550 = vmatpush2.bf16.msra.mxu0 %v1201
        %1551 = vmatprep.subr.bf16.mxu0 %v1200
        %1552 = vmatpush2.bf16.msra.mxu0 %v1199
        %1553 = vmatprep.subr.bf16.mxu0 %v1198
        %1554 = vmatpush2.bf16.msra.mxu0 %v1197
        %1555 = vmatprep.subr.bf16.mxu0 %v1196
        %1556 = vmatpush2.bf16.msra.mxu0 %v1195
        %1557 = vmatprep.subr.bf16.mxu0 %v1194
        %1558 = vmatpush2.bf16.msra.mxu0 %v1193
        %1559 = vmatprep.subr.bf16.mxu0 %v1192
        %1560 = vmatpush2.bf16.msra.mxu0 %v1191
        %1561 = vmatprep.mubr.bf16.mxu0 %v732
        %1562 = vmatmul.mubr.bf16.gmra.mxu0 %v731
        %v1563 = vpop.f32.mrf.mxu0
        %v1564 = vadd.f32 %v1451, %v1563
        %v1565 = vpop.f32.mrf.mxu0
        %v1566 = vadd.f32 %v1453, %v1565
        %v1567 = vpop.f32.mrf.mxu0
        %v1568 = vadd.f32 %v1455, %v1567
        %v1569 = vpop.f32.mrf.mxu0
        %v1570 = vadd.f32 %v1457, %v1569
        %1571 = vmatprep.mubr.bf16.mxu0 %v738
        %1572 = vmatmul.mubr.bf16.gmra.mxu0 %v737
        %v1573 = vpop.f32.mrf.mxu0
        %v1574 = vadd.f32 %v1461, %v1573
        %v1575 = vpop.f32.mrf.mxu0
        %v1576 = vadd.f32 %v1463, %v1575
        %v1577 = vpop.f32.mrf.mxu0
        %v1578 = vadd.f32 %v1465, %v1577
        %v1579 = vpop.f32.mrf.mxu0
        %v1580 = vadd.f32 %v1467, %v1579
        %1581 = vmatprep.mubr.bf16.mxu0 %v744
        %1582 = vmatmul.mubr.bf16.gmra.mxu0 %v743
        %v1583 = vpop.f32.mrf.mxu0
        %v1584 = vadd.f32 %v1471, %v1583
        %v1585 = vpop.f32.mrf.mxu0
        %v1586 = vadd.f32 %v1473, %v1585
        %v1587 = vpop.f32.mrf.mxu0
        %v1588 = vadd.f32 %v1475, %v1587
        %v1589 = vpop.f32.mrf.mxu0
        %v1590 = vadd.f32 %v1477, %v1589
        %1591 = vmatprep.mubr.bf16.mxu0 %v750
        %1592 = vmatmul.mubr.bf16.gmra.mxu0 %v749
        %v1593 = vpop.f32.mrf.mxu0
        %v1594 = vadd.f32 %v1481, %v1593
        %v1595 = vpop.f32.mrf.mxu0
        %v1596 = vadd.f32 %v1483, %v1595
        %v1597 = vpop.f32.mrf.mxu0
        %v1598 = vadd.f32 %v1485, %v1597
        %v1599 = vpop.f32.mrf.mxu0
        %v1600 = vadd.f32 %v1487, %v1599
        %1601 = vmatprep.mubr.bf16.mxu0 %v756
        %1602 = vmatmul.mubr.bf16.gmra.mxu0 %v755
        %v1603 = vpop.f32.mrf.mxu0
        %v1604 = vadd.f32 %v1491, %v1603
        %v1605 = vpop.f32.mrf.mxu0
        %v1606 = vadd.f32 %v1493, %v1605
        %v1607 = vpop.f32.mrf.mxu0
        %v1608 = vadd.f32 %v1495, %v1607
        %v1609 = vpop.f32.mrf.mxu0
        %v1610 = vadd.f32 %v1497, %v1609
        %1611 = vmatprep.mubr.bf16.mxu0 %v762
        %1612 = vmatmul.mubr.bf16.gmra.mxu0 %v761
        %v1613 = vpop.f32.mrf.mxu0
        %v1614 = vadd.f32 %v1501, %v1613
        %v1615 = vpop.f32.mrf.mxu0
        %v1616 = vadd.f32 %v1503, %v1615
        %v1617 = vpop.f32.mrf.mxu0
        %v1618 = vadd.f32 %v1505, %v1617
        %v1619 = vpop.f32.mrf.mxu0
        %v1620 = vadd.f32 %v1507, %v1619
        %1621 = vmatprep.mubr.bf16.mxu0 %v768
        %1622 = vmatmul.mubr.bf16.gmra.mxu0 %v767
        %v1623 = vpop.f32.mrf.mxu0
        %v1624 = vadd.f32 %v1511, %v1623
        %v1625 = vpop.f32.mrf.mxu0
        %v1626 = vadd.f32 %v1513, %v1625
        %v1627 = vpop.f32.mrf.mxu0
        %v1628 = vadd.f32 %v1515, %v1627
        %v1629 = vpop.f32.mrf.mxu0
        %v1630 = vadd.f32 %v1517, %v1629
        %1631 = vmatprep.mubr.bf16.mxu0 %v774
        %1632 = vmatmul.mubr.bf16.gmra.mxu0 %v773
        %v1633 = vpop.f32.mrf.mxu0
        %v1634 = vadd.f32 %v1521, %v1633
        %v1635 = vpop.f32.mrf.mxu0
        %v1636 = vadd.f32 %v1523, %v1635
        %v1637 = vpop.f32.mrf.mxu0
        %v1638 = vadd.f32 %v1525, %v1637
        %v1639 = vpop.f32.mrf.mxu0
        %v1640 = vadd.f32 %v1527, %v1639
        %1641 = vdwg.mxu0
        %v1642 = vmax.f32 %v1564, 0.0
        %v1643 = vmax.f32 %v1566, 0.0
        %v1644 = vmax.f32 %v1568, 0.0
        %v1645 = vmax.f32 %v1570, 0.0
        %v1646 = vmax.f32 %v1574, 0.0
        %v1647 = vmax.f32 %v1576, 0.0
        %v1648 = vmax.f32 %v1578, 0.0
        %v1649 = vmax.f32 %v1580, 0.0
        %v1650 = vmax.f32 %v1584, 0.0
        %v1651 = vmax.f32 %v1586, 0.0
        %v1652 = vmax.f32 %v1588, 0.0
        %v1653 = vmax.f32 %v1590, 0.0
        %v1654 = vmax.f32 %v1594, 0.0
        %v1655 = vmax.f32 %v1596, 0.0
        %v1656 = vmax.f32 %v1598, 0.0
        %v1657 = vmax.f32 %v1600, 0.0
        %v1658 = vmax.f32 %v1604, 0.0
        %v1659 = vmax.f32 %v1606, 0.0
        %v1660 = vmax.f32 %v1608, 0.0
        %v1661 = vmax.f32 %v1610, 0.0
        %v1662 = vmax.f32 %v1614, 0.0
        %v1663 = vmax.f32 %v1616, 0.0
        %v1664 = vmax.f32 %v1618, 0.0
        %v1665 = vmax.f32 %v1620, 0.0
        %v1666 = vmax.f32 %v1624, 0.0
        %v1667 = vmax.f32 %v1626, 0.0
        %v1668 = vmax.f32 %v1628, 0.0
        %v1669 = vmax.f32 %v1630, 0.0
        %v1670 = vmax.f32 %v1634, 0.0
        %v1671 = vmax.f32 %v1636, 0.0
        %v1672 = vmax.f32 %v1638, 0.0
        %v1673 = vmax.f32 %v1640, 0.0
        %v1674 = vpack.c.bf16 %v1644, %v1642
        %v1675 = vpack.c.bf16 %v1645, %v1643
        %v1676 = vpack.c.bf16 %v1648, %v1646
        %v1677 = vpack.c.bf16 %v1649, %v1647
        %v1678 = vpack.c.bf16 %v1652, %v1650
        %v1679 = vpack.c.bf16 %v1653, %v1651
        %v1680 = vpack.c.bf16 %v1656, %v1654
        %v1681 = vpack.c.bf16 %v1657, %v1655
        %v1682 = vpack.c.bf16 %v1660, %v1658
        %v1683 = vpack.c.bf16 %v1661, %v1659
        %v1684 = vpack.c.bf16 %v1664, %v1662
        %v1685 = vpack.c.bf16 %v1665, %v1663
        %v1686 = vpack.c.bf16 %v1668, %v1666
        %v1687 = vpack.c.bf16 %v1669, %v1667
        %v1688 = vpack.c.bf16 %v1672, %v1670
        %v1689 = vpack.c.bf16 %v1673, %v1671
        %1691 = vset.pattern.permute.xlu0 0
        %1692 = vperm.xlu0 %1691, %v375
        %v1693 = vpop.permute.xlu0 %1692
        %1696 = vset.pattern.permute.xlu0 0
        %1697 = vperm.xlu0 %1696, %v376
        %v1698 = vpop.permute.xlu0 %1697
        %1701 = vset.pattern.permute.xlu0 0
        %1702 = vperm.xlu0 %1701, %v377
        %v1703 = vpop.permute.xlu0 %1702
        %1706 = vset.pattern.permute.xlu0 0
        %1707 = vperm.xlu0 %1706, %v378
        %v1708 = vpop.permute.xlu0 %1707
        %1711 = vset.pattern.permute.xlu0 0
        %1712 = vperm.xlu0 %1711, %v379
        %v1713 = vpop.permute.xlu0 %1712
        %1716 = vset.pattern.permute.xlu0 0
        %1717 = vperm.xlu0 %1716, %v380
        %v1718 = vpop.permute.xlu0 %1717
        %1721 = vset.pattern.permute.xlu0 0
        %1722 = vperm.xlu0 %1721, %v381
        %v1723 = vpop.permute.xlu0 %1722
        %1726 = vset.pattern.permute.xlu0 0
        %1727 = vperm.xlu0 %1726, %v382
        %v1728 = vpop.permute.xlu0 %1727
        %1731 = vset.pattern.permute.xlu0 0
        %1732 = vperm.xlu0 %1731, %v383
        %v1733 = vpop.permute.xlu0 %1732
        %1736 = vset.pattern.permute.xlu0 0
        %1737 = vperm.xlu0 %1736, %v384
        %v1738 = vpop.permute.xlu0 %1737
        %1741 = vset.pattern.permute.xlu0 0
        %1742 = vperm.xlu0 %1741, %v385
        %v1743 = vpop.permute.xlu0 %1742
        %1746 = vset.pattern.permute.xlu0 0
        %1747 = vperm.xlu0 %1746, %v386
        %v1748 = vpop.permute.xlu0 %1747
        %1751 = vset.pattern.permute.xlu0 0
        %1752 = vperm.xlu0 %1751, %v387
        %v1753 = vpop.permute.xlu0 %1752
        %1756 = vset.pattern.permute.xlu0 0
        %1757 = vperm.xlu0 %1756, %v388
        %v1758 = vpop.permute.xlu0 %1757
        %1761 = vset.pattern.permute.xlu0 0
        %1762 = vperm.xlu0 %1761, %v389
        %v1763 = vpop.permute.xlu0 %1762
        %1766 = vset.pattern.permute.xlu0 0
        %1767 = vperm.xlu0 %1766, %v390
        %v1768 = vpop.permute.xlu0 %1767
        %1771 = vset.pattern.permute.xlu0 0
        %1772 = vperm.xlu0 %1771, %v391
        %v1773 = vpop.permute.xlu0 %1772
        %1776 = vset.pattern.permute.xlu0 0
        %1777 = vperm.xlu0 %1776, %v392
        %v1778 = vpop.permute.xlu0 %1777
        %1781 = vset.pattern.permute.xlu0 0
        %1782 = vperm.xlu0 %1781, %v393
        %v1783 = vpop.permute.xlu0 %1782
        %1786 = vset.pattern.permute.xlu0 0
        %1787 = vperm.xlu0 %1786, %v394
        %v1788 = vpop.permute.xlu0 %1787
        %1791 = vset.pattern.permute.xlu0 0
        %1792 = vperm.xlu0 %1791, %v395
        %v1793 = vpop.permute.xlu0 %1792
        %1796 = vset.pattern.permute.xlu0 0
        %1797 = vperm.xlu0 %1796, %v396
        %v1798 = vpop.permute.xlu0 %1797
        %1801 = vset.pattern.permute.xlu0 0
        %1802 = vperm.xlu0 %1801, %v397
        %v1803 = vpop.permute.xlu0 %1802
        %1806 = vset.pattern.permute.xlu0 0
        %1807 = vperm.xlu0 %1806, %v398
        %v1808 = vpop.permute.xlu0 %1807
        %1811 = vset.pattern.permute.xlu0 0
        %1812 = vperm.xlu0 %1811, %v399
        %v1813 = vpop.permute.xlu0 %1812
        %1816 = vset.pattern.permute.xlu0 0
        %1817 = vperm.xlu0 %1816, %v400
        %v1818 = vpop.permute.xlu0 %1817
        %1821 = vset.pattern.permute.xlu0 0
        %1822 = vperm.xlu0 %1821, %v401
        %v1823 = vpop.permute.xlu0 %1822
        %1826 = vset.pattern.permute.xlu0 0
        %1827 = vperm.xlu0 %1826, %v402
        %v1828 = vpop.permute.xlu0 %1827
        %1831 = vset.pattern.permute.xlu0 0
        %1832 = vperm.xlu0 %1831, %v403
        %v1833 = vpop.permute.xlu0 %1832
        %1836 = vset.pattern.permute.xlu0 0
        %1837 = vperm.xlu0 %1836, %v404
        %v1838 = vpop.permute.xlu0 %1837
        %1841 = vset.pattern.permute.xlu0 0
        %1842 = vperm.xlu0 %1841, %v405
        %v1843 = vpop.permute.xlu0 %1842
        %1846 = vset.pattern.permute.xlu0 0
        %1847 = vperm.xlu0 %1846, %v406
        %v1848 = vpop.permute.xlu0 %1847
        %v1882 = vunpack.c.l.b16 %v343
        %v1883 = vunpack.c.l.b16 %v344
        %v1884 = vunpack.c.l.b16 %v345
        %v1885 = vunpack.c.l.b16 %v346
        %v1886 = vunpack.c.l.b16 %v347
        %v1887 = vunpack.c.l.b16 %v348
        %v1888 = vunpack.c.l.b16 %v349
        %v1889 = vunpack.c.l.b16 %v350
        %v1890 = vunpack.c.l.b16 %v351
        %v1891 = vunpack.c.l.b16 %v352
        %v1892 = vunpack.c.l.b16 %v353
        %v1893 = vunpack.c.l.b16 %v354
        %v1894 = vunpack.c.l.b16 %v355
        %v1895 = vunpack.c.l.b16 %v356
        %v1896 = vunpack.c.l.b16 %v357
        %v1897 = vunpack.c.l.b16 %v358
        %v1898 = vunpack.c.l.b16 %v359
        %v1899 = vunpack.c.l.b16 %v360
        %v1900 = vunpack.c.l.b16 %v361
        %v1901 = vunpack.c.l.b16 %v362
        %v1902 = vunpack.c.l.b16 %v363
        %v1903 = vunpack.c.l.b16 %v364
        %v1904 = vunpack.c.l.b16 %v365
        %v1905 = vunpack.c.l.b16 %v366
        %v1906 = vunpack.c.l.b16 %v367
        %v1907 = vunpack.c.l.b16 %v368
        %v1908 = vunpack.c.l.b16 %v369
        %v1909 = vunpack.c.l.b16 %v370
        %v1910 = vunpack.c.l.b16 %v371
        %v1911 = vunpack.c.l.b16 %v372
        %v1912 = vunpack.c.l.b16 %v373
        %v1913 = vunpack.c.l.b16 %v374
        %v1914 = vpack.c.b16 %v1883, %v1882
        %v1915 = vpack.c.b16 %v1885, %v1884
        %v1916 = vpack.c.b16 %v1887, %v1886
        %v1917 = vpack.c.b16 %v1889, %v1888
        %v1918 = vpack.c.b16 %v1891, %v1890
        %v1919 = vpack.c.b16 %v1893, %v1892
        %v1920 = vpack.c.b16 %v1895, %v1894
        %v1921 = vpack.c.b16 %v1897, %v1896
        %v1922 = vpack.c.b16 %v1899, %v1898
        %v1923 = vpack.c.b16 %v1901, %v1900
        %v1924 = vpack.c.b16 %v1903, %v1902
        %v1925 = vpack.c.b16 %v1905, %v1904
        %v1926 = vpack.c.b16 %v1907, %v1906
        %v1927 = vpack.c.b16 %v1909, %v1908
        %v1928 = vpack.c.b16 %v1911, %v1910
        %v1929 = vpack.c.b16 %v1913, %v1912
        %1946 = vmatprep.subr.bf16.mxu0 %v1689
        %1947 = vmatpush1.bf16.msra.mxu0 %v1688
        %1948 = vmatprep.subr.bf16.mxu0 %v1687
        %1949 = vmatpush1.bf16.msra.mxu0 %v1686
        %1950 = vmatprep.subr.bf16.mxu0 %v1685
        %1951 = vmatpush1.bf16.msra.mxu0 %v1684
        %1952 = vmatprep.subr.bf16.mxu0 %v1683
        %1953 = vmatpush1.bf16.msra.mxu0 %v1682
        %1954 = vmatprep.subr.bf16.mxu0 %v1681
        %1955 = vmatpush1.bf16.msra.mxu0 %v1680
        %1956 = vmatprep.subr.bf16.mxu0 %v1679
        %1957 = vmatpush1.bf16.msra.mxu0 %v1678
        %1958 = vmatprep.subr.bf16.mxu0 %v1677
        %1959 = vmatpush1.bf16.msra.mxu0 %v1676
        %1960 = vmatprep.subr.bf16.mxu0 %v1675
        %1961 = vmatpush1.bf16.msra.mxu0 %v1674
        %1962 = vmatprep.subr.bf16.mxu0 0
        %1963 = vmatpush2.bf16.msra.mxu0 0
        %1964 = vmatprep.subr.bf16.mxu0 0
        %1965 = vmatpush2.bf16.msra.mxu0 0
        %1966 = vmatprep.subr.bf16.mxu0 0
        %1967 = vmatpush2.bf16.msra.mxu0 0
        %1968 = vmatprep.subr.bf16.mxu0 0
        %1969 = vmatpush2.bf16.msra.mxu0 0
        %1970 = vmatprep.subr.bf16.mxu0 0
        %1971 = vmatpush2.bf16.msra.mxu0 0
        %1972 = vmatprep.subr.bf16.mxu0 0
        %1973 = vmatpush2.bf16.msra.mxu0 0
        %1974 = vmatprep.subr.bf16.mxu0 0
        %1975 = vmatpush2.bf16.msra.mxu0 0
        %1976 = vmatprep.subr.bf16.mxu0 0
        %1977 = vmatpush2.bf16.msra.mxu0 0
        %1978 = vmatprep.mubr.bf16.mxu0 0
        %1979 = vmatmul.mubr.bf16.gmra.mxu0 %v1914
        %v1980 = vpop.f32.mrf.mxu0
        %v1981 = vadd.f32 %v1693, %v1980
        %v1982 = vpop.f32.mrf.mxu0
        %v1983 = vadd.f32 %v1693, %v1982
        %v1984 = vpop.f32.mrf.mxu0
        %v1985 = vadd.f32 %v1698, %v1984
        %v1986 = vpop.f32.mrf.mxu0
        %v1987 = vadd.f32 %v1698, %v1986
        %1988 = vmatprep.mubr.bf16.mxu0 0
        %1989 = vmatmul.mubr.bf16.gmra.mxu0 %v1915
        %v1990 = vpop.f32.mrf.mxu0
        %v1991 = vadd.f32 %v1703, %v1990
        %v1992 = vpop.f32.mrf.mxu0
        %v1993 = vadd.f32 %v1703, %v1992
        %v1994 = vpop.f32.mrf.mxu0
        %v1995 = vadd.f32 %v1708, %v1994
        %v1996 = vpop.f32.mrf.mxu0
        %v1997 = vadd.f32 %v1708, %v1996
        %1998 = vmatprep.mubr.bf16.mxu0 0
        %1999 = vmatmul.mubr.bf16.gmra.mxu0 %v1916
        %v2000 = vpop.f32.mrf.mxu0
        %v2001 = vadd.f32 %v1713, %v2000
        %v2002 = vpop.f32.mrf.mxu0
        %v2003 = vadd.f32 %v1713, %v2002
        %v2004 = vpop.f32.mrf.mxu0
        %v2005 = vadd.f32 %v1718, %v2004
        %v2006 = vpop.f32.mrf.mxu0
        %v2007 = vadd.f32 %v1718, %v2006
        %2008 = vmatprep.mubr.bf16.mxu0 0
        %2009 = vmatmul.mubr.bf16.gmra.mxu0 %v1917
        %v2010 = vpop.f32.mrf.mxu0
        %v2011 = vadd.f32 %v1723, %v2010
        %v2012 = vpop.f32.mrf.mxu0
        %v2013 = vadd.f32 %v1723, %v2012
        %v2014 = vpop.f32.mrf.mxu0
        %v2015 = vadd.f32 %v1728, %v2014
        %v2016 = vpop.f32.mrf.mxu0
        %v2017 = vadd.f32 %v1728, %v2016
        %2018 = vmatprep.mubr.bf16.mxu0 0
        %2019 = vmatmul.mubr.bf16.gmra.mxu0 %v1918
        %v2020 = vpop.f32.mrf.mxu0
        %v2021 = vadd.f32 %v1733, %v2020
        %v2022 = vpop.f32.mrf.mxu0
        %v2023 = vadd.f32 %v1733, %v2022
        %v2024 = vpop.f32.mrf.mxu0
        %v2025 = vadd.f32 %v1738, %v2024
        %v2026 = vpop.f32.mrf.mxu0
        %v2027 = vadd.f32 %v1738, %v2026
        %2028 = vmatprep.mubr.bf16.mxu0 0
        %2029 = vmatmul.mubr.bf16.gmra.mxu0 %v1919
        %v2030 = vpop.f32.mrf.mxu0
        %v2031 = vadd.f32 %v1743, %v2030
        %v2032 = vpop.f32.mrf.mxu0
        %v2033 = vadd.f32 %v1743, %v2032
        %v2034 = vpop.f32.mrf.mxu0
        %v2035 = vadd.f32 %v1748, %v2034
        %v2036 = vpop.f32.mrf.mxu0
        %v2037 = vadd.f32 %v1748, %v2036
        %2038 = vmatprep.mubr.bf16.mxu0 0
        %2039 = vmatmul.mubr.bf16.gmra.mxu0 %v1920
        %v2040 = vpop.f32.mrf.mxu0
        %v2041 = vadd.f32 %v1753, %v2040
        %v2042 = vpop.f32.mrf.mxu0
        %v2043 = vadd.f32 %v1753, %v2042
        %v2044 = vpop.f32.mrf.mxu0
        %v2045 = vadd.f32 %v1758, %v2044
        %v2046 = vpop.f32.mrf.mxu0
        %v2047 = vadd.f32 %v1758, %v2046
        %2048 = vmatprep.mubr.bf16.mxu0 0
        %2049 = vmatmul.mubr.bf16.gmra.mxu0 %v1921
        %v2050 = vpop.f32.mrf.mxu0
        %v2051 = vadd.f32 %v1763, %v2050
        %v2052 = vpop.f32.mrf.mxu0
        %v2053 = vadd.f32 %v1763, %v2052
        %v2054 = vpop.f32.mrf.mxu0
        %v2055 = vadd.f32 %v1768, %v2054
        %v2056 = vpop.f32.mrf.mxu0
        %v2057 = vadd.f32 %v1768, %v2056
        %2058 = vmatprep.mubr.bf16.mxu0 0
        %2059 = vmatmul.mubr.bf16.gmra.mxu0 %v1922
        %v2060 = vpop.f32.mrf.mxu0
        %v2061 = vadd.f32 %v1773, %v2060
        %v2062 = vpop.f32.mrf.mxu0
        %v2063 = vadd.f32 %v1773, %v2062
        %v2064 = vpop.f32.mrf.mxu0
        %v2065 = vadd.f32 %v1778, %v2064
        %v2066 = vpop.f32.mrf.mxu0
        %v2067 = vadd.f32 %v1778, %v2066
        %2068 = vmatprep.mubr.bf16.mxu0 0
        %2069 = vmatmul.mubr.bf16.gmra.mxu0 %v1923
        %v2070 = vpop.f32.mrf.mxu0
        %v2071 = vadd.f32 %v1783, %v2070
        %v2072 = vpop.f32.mrf.mxu0
        %v2073 = vadd.f32 %v1783, %v2072
        %v2074 = vpop.f32.mrf.mxu0
        %v2075 = vadd.f32 %v1788, %v2074
        %v2076 = vpop.f32.mrf.mxu0
        %v2077 = vadd.f32 %v1788, %v2076
        %2078 = vmatprep.mubr.bf16.mxu0 0
        %2079 = vmatmul.mubr.bf16.gmra.mxu0 %v1924
        %v2080 = vpop.f32.mrf.mxu0
        %v2081 = vadd.f32 %v1793, %v2080
        %v2082 = vpop.f32.mrf.mxu0
        %v2083 = vadd.f32 %v1793, %v2082
        %v2084 = vpop.f32.mrf.mxu0
        %v2085 = vadd.f32 %v1798, %v2084
        %v2086 = vpop.f32.mrf.mxu0
        %v2087 = vadd.f32 %v1798, %v2086
        %2088 = vmatprep.mubr.bf16.mxu0 0
        %2089 = vmatmul.mubr.bf16.gmra.mxu0 %v1925
        %v2090 = vpop.f32.mrf.mxu0
        %v2091 = vadd.f32 %v1803, %v2090
        %v2092 = vpop.f32.mrf.mxu0
        %v2093 = vadd.f32 %v1803, %v2092
        %v2094 = vpop.f32.mrf.mxu0
        %v2095 = vadd.f32 %v1808, %v2094
        %v2096 = vpop.f32.mrf.mxu0
        %v2097 = vadd.f32 %v1808, %v2096
        %2098 = vmatprep.mubr.bf16.mxu0 0
        %2099 = vmatmul.mubr.bf16.gmra.mxu0 %v1926
        %v2100 = vpop.f32.mrf.mxu0
        %v2101 = vadd.f32 %v1813, %v2100
        %v2102 = vpop.f32.mrf.mxu0
        %v2103 = vadd.f32 %v1813, %v2102
        %v2104 = vpop.f32.mrf.mxu0
        %v2105 = vadd.f32 %v1818, %v2104
        %v2106 = vpop.f32.mrf.mxu0
        %v2107 = vadd.f32 %v1818, %v2106
        %2108 = vmatprep.mubr.bf16.mxu0 0
        %2109 = vmatmul.mubr.bf16.gmra.mxu0 %v1927
        %v2110 = vpop.f32.mrf.mxu0
        %v2111 = vadd.f32 %v1823, %v2110
        %v2112 = vpop.f32.mrf.mxu0
        %v2113 = vadd.f32 %v1823, %v2112
        %v2114 = vpop.f32.mrf.mxu0
        %v2115 = vadd.f32 %v1828, %v2114
        %v2116 = vpop.f32.mrf.mxu0
        %v2117 = vadd.f32 %v1828, %v2116
        %2118 = vmatprep.mubr.bf16.mxu0 0
        %2119 = vmatmul.mubr.bf16.gmra.mxu0 %v1928
        %v2120 = vpop.f32.mrf.mxu0
        %v2121 = vadd.f32 %v1833, %v2120
        %v2122 = vpop.f32.mrf.mxu0
        %v2123 = vadd.f32 %v1833, %v2122
        %v2124 = vpop.f32.mrf.mxu0
        %v2125 = vadd.f32 %v1838, %v2124
        %v2126 = vpop.f32.mrf.mxu0
        %v2127 = vadd.f32 %v1838, %v2126
        %2128 = vmatprep.mubr.bf16.mxu0 0
        %2129 = vmatmul.mubr.bf16.gmra.mxu0 %v1929
        %v2130 = vpop.f32.mrf.mxu0
        %v2131 = vadd.f32 %v1843, %v2130
        %v2132 = vpop.f32.mrf.mxu0
        %v2133 = vadd.f32 %v1843, %v2132
        %v2134 = vpop.f32.mrf.mxu0
        %v2135 = vadd.f32 %v1848, %v2134
        %v2136 = vpop.f32.mrf.mxu0
        %v2137 = vadd.f32 %v1848, %v2136
        %2138 = vdwg.mxu0
        %2139 = vst [vmem:[%s275] sm:$0xff] %v1981
        %2140 = vst [vmem:[%s275 + $0x8] sm:$0xff] %v1983
        %2141 = vst [vmem:[%s275 + $0x10] sm:$0xff] %v1985
        %2142 = vst [vmem:[%s275 + $0x18] sm:$0xff] %v1987
        %2143 = vst [vmem:[%s275 + $0x20] sm:$0xff] %v1991
        %2144 = vst [vmem:[%s275 + $0x28] sm:$0xff] %v1993
        %2145 = vst [vmem:[%s275 + $0x30] sm:$0xff] %v1995
        %2146 = vst [vmem:[%s275 + $0x38] sm:$0xff] %v1997
        %2147 = vst [vmem:[%s275 + $0x40] sm:$0xff] %v2001
        %2148 = vst [vmem:[%s275 + $0x48] sm:$0xff] %v2003
        %2149 = vst [vmem:[%s275 + $0x50] sm:$0xff] %v2005
        %2150 = vst [vmem:[%s275 + $0x58] sm:$0xff] %v2007
        %2151 = vst [vmem:[%s275 + $0x60] sm:$0xff] %v2011
        %2152 = vst [vmem:[%s275 + $0x68] sm:$0xff] %v2013
        %2153 = vst [vmem:[%s275 + $0x70] sm:$0xff] %v2015
        %2154 = vst [vmem:[%s275 + $0x78] sm:$0xff] %v2017
        %2155 = vst [vmem:[%s275 + $0x80] sm:$0xff] %v2021
        %2156 = vst [vmem:[%s275 + $0x88] sm:$0xff] %v2023
        %2157 = vst [vmem:[%s275 + $0x90] sm:$0xff] %v2025
        %2158 = vst [vmem:[%s275 + $0x98] sm:$0xff] %v2027
        %2159 = vst [vmem:[%s275 + $0xa0] sm:$0xff] %v2031
        %2160 = vst [vmem:[%s275 + $0xa8] sm:$0xff] %v2033
        %2161 = vst [vmem:[%s275 + $0xb0] sm:$0xff] %v2035
        %2162 = vst [vmem:[%s275 + $0xb8] sm:$0xff] %v2037
        %2163 = vst [vmem:[%s275 + $0xc0] sm:$0xff] %v2041
        %2164 = vst [vmem:[%s275 + $0xc8] sm:$0xff] %v2043
        %2165 = vst [vmem:[%s275 + $0xd0] sm:$0xff] %v2045
        %2166 = vst [vmem:[%s275 + $0xd8] sm:$0xff] %v2047
        %2167 = vst [vmem:[%s275 + $0xe0] sm:$0xff] %v2051
        %2168 = vst [vmem:[%s275 + $0xe8] sm:$0xff] %v2053
        %2169 = vst [vmem:[%s275 + $0xf0] sm:$0xff] %v2055
        %2170 = vst [vmem:[%s275 + $0xf8] sm:$0xff] %v2057
        %2171 = vst [vmem:[%s275 + $0x100] sm:$0xff] %v2061
        %2172 = vst [vmem:[%s275 + $0x108] sm:$0xff] %v2063
        %2173 = vst [vmem:[%s275 + $0x110] sm:$0xff] %v2065
        %2174 = vst [vmem:[%s275 + $0x118] sm:$0xff] %v2067
        %2175 = vst [vmem:[%s275 + $0x120] sm:$0xff] %v2071
        %2176 = vst [vmem:[%s275 + $0x128] sm:$0xff] %v2073
        %2177 = vst [vmem:[%s275 + $0x130] sm:$0xff] %v2075
        %2178 = vst [vmem:[%s275 + $0x138] sm:$0xff] %v2077
        %2179 = vst [vmem:[%s275 + $0x140] sm:$0xff] %v2081
        %2180 = vst [vmem:[%s275 + $0x148] sm:$0xff] %v2083
        %2181 = vst [vmem:[%s275 + $0x150] sm:$0xff] %v2085
        %2182 = vst [vmem:[%s275 + $0x158] sm:$0xff] %v2087
        %2183 = vst [vmem:[%s275 + $0x160] sm:$0xff] %v2091
        %2184 = vst [vmem:[%s275 + $0x168] sm:$0xff] %v2093
        %2185 = vst [vmem:[%s275 + $0x170] sm:$0xff] %v2095
        %2186 = vst [vmem:[%s275 + $0x178] sm:$0xff] %v2097
        %2187 = vst [vmem:[%s275 + $0x180] sm:$0xff] %v2101
        %2188 = vst [vmem:[%s275 + $0x188] sm:$0xff] %v2103
        %2189 = vst [vmem:[%s275 + $0x190] sm:$0xff] %v2105
        %2190 = vst [vmem:[%s275 + $0x198] sm:$0xff] %v2107
        %2191 = vst [vmem:[%s275 + $0x1a0] sm:$0xff] %v2111
        %2192 = vst [vmem:[%s275 + $0x1a8] sm:$0xff] %v2113
        %2193 = vst [vmem:[%s275 + $0x1b0] sm:$0xff] %v2115
        %2194 = vst [vmem:[%s275 + $0x1b8] sm:$0xff] %v2117
        %2195 = vst [vmem:[%s275 + $0x1c0] sm:$0xff] %v2121
        %2196 = vst [vmem:[%s275 + $0x1c8] sm:$0xff] %v2123
        %2197 = vst [vmem:[%s275 + $0x1d0] sm:$0xff] %v2125
        %2198 = vst [vmem:[%s275 + $0x1d8] sm:$0xff] %v2127
        %2199 = vst [vmem:[%s275 + $0x1e0] sm:$0xff] %v2131
        %2200 = vst [vmem:[%s275 + $0x1e8] sm:$0xff] %v2133
        %2201 = vst [vmem:[%s275 + $0x1f0] sm:$0xff] %v2135
        %2202 = vst [vmem:[%s275 + $0x1f8] sm:$0xff] %v2137
        %s2203 = sand.u32 %s157, 1
        %s2204 = scalar_lea.sflag [#allocation4], %s2203
        %s2205 = sand.u32 %s157, 1
        %s2206 = smul.addr %s2205, 512
        %s2207 = scalar_lea.vmem [#allocation7], %s2206
        // Predicated region
        $region49: #{tpu_custom_call.1} parent=39 // pred_check
          %p2208 = pneg %p167
        $region50: #{tpu_custom_call.1} parent=39 // pred_check_branch
          %2210 = sbr.rel (%p2208) target = $region52
        $region51: #{tpu_custom_call.1} parent=39 // pred_region
          %s2211 = smul.u32 2, %s28
          %s2213 = ssub.s32 8192, 8192
          %2214 = vsyncadd %s2204, %s2213
          %s2215 = smul.addr %s27, 64
          %s2216 = sadd.s32 %s2211, %s2215
          %s2217 = smul.addr %s2216, 128
          %s2218 = scalar_lea.hbm %s5, %s2217
          %s2219 = sshll.u32 %s2207, 4
          %s2220 = int_to_ptr.vmem [resolvable:$true] %s2219
          %2225 = dma.vmem_to_hbm [thread:$0]  %s2220, 8192, %s2218, %s2204, 256, 256, 16
        $region52: #{tpu_custom_call.1} parent=39 // pred_fallthru
          _
      $region40: #{tpu_custom_call.1} parent=5 // pred_fallthru
        _
      %p2226 = scmp.le.s32.totalorder 2, %s18
      // Predicated region
      $region53: #{tpu_custom_call.1} parent=5 // pred_check
        %p2227 = pneg %p2226
      $region54: #{tpu_custom_call.1} parent=5 // pred_check_branch
        %2229 = sbr.rel (%p2227) target = $region56
      $region55: #{tpu_custom_call.1} parent=5 // pred_region
        %s2230 = ssub.s32 %s18, 2
        // Predicated region
        $region57: #{tpu_custom_call.1} parent=55 // pred_check
          %p2231 = pneg %p173
        $region58: #{tpu_custom_call.1} parent=55 // pred_check_branch
          %2233 = sbr.rel (%p2231) target = $region60
        $region59: #{tpu_custom_call.1} parent=55 // pred_region
          %s2234 = sand.u32 %s158, 1
          %s2235 = scalar_lea.sflag [#allocation4], %s2234
          %s2236 = sand.u32 %s158, 1
          %s2237 = smul.addr %s2236, 512
          %s2238 = scalar_lea.vmem [#allocation7], %s2237
          %2239 = dma.done %s2235, 8192
        $region60: #{tpu_custom_call.1} parent=55 // pred_fallthru
          _
      $region56: #{tpu_custom_call.1} parent=5 // pred_fallthru
        _
    $region6: #{tpu_custom_call.1} parent=1 // loop_footer
      %s22 = sadd.s32 1, %s18
    $region7: #{tpu_custom_call.1} parent=1 // loop_footer_branch
      %17 = sbr.rel target = $region3
    $region8: #{tpu_custom_call.1} parent=1 // loop_exit
      _
    %2240 = vsyncpa [#allocation3], 1
    %s2241 = scalar_lea.sflag [#allocation3], 1
    %2242 = vsyncpa %s2241, 1
    %2243 = vsyncpa [#allocation6], 1
    %2244 = vsyncpa [#allocation4], 1
    %s2245 = scalar_lea.sflag [#allocation4], 1
    %2246 = vsyncpa %s2245, 1

</llo_original>
